<compile_context>
chip_gen: v5e
topology: v5e:2x2
jax: 0.10.0
libtpu: 0.0.40
codegen_flags: <defaults>
</compile_context>

<pallas_src>
import math

import jax
import jax.numpy as jnp
from jax.experimental import pallas as pl
from jax.experimental.pallas import tpu as pltpu


# bf16 is MXU-native on v5e/v6e/v7x; accumulation stays f32 via
# preferred_element_type, and all transcendental / LN / softmax math is f32.
COMPUTE_DTYPE = jnp.bfloat16


def _vmem_limit_bytes():
    """Scoped VMEM limit derived from the actual part (64 MiB on v7x)."""
    try:
        cap = int(pltpu.get_tpu_info().vmem_capacity_bytes)
        if cap <= 0:
            raise ValueError("bad vmem capacity")
    except Exception:
        cap = 64 * 1024 * 1024
    return max(32 * 1024 * 1024, min(cap - (16 << 20), 100 * 1024 * 1024))


VMEM_LIMIT_BYTES = _vmem_limit_bytes()


# ----------------------------------------------------------------------------
# small helpers
# ----------------------------------------------------------------------------
def _round_up(x, m):
    return ((x + m - 1) // m) * m


def _choose_tile(n, max_tile=512):
    """Largest token tile dividing n that is either == n or a multiple of 8."""
    if n <= max_tile:
        return n
    t = max_tile - (max_tile % 8)
    while t >= 8:
        if n % t == 0:
            return t
        t -= 8
    return n


# ----------------------------------------------------------------------------
# 1) fused encoder kernel  (slot-major output: (B, 3, NT, H))
# ----------------------------------------------------------------------------
def make_encoder_kernel(use_s_drop, use_r_drop):
    def kernel(*args):
        (s_ref, a_ref, r_ref,
         sw1, sb1, sw2, sb2,
         aw1, ab1, aw2, ab2,
         rw1, rb1, rw2, rb2,
         tqr, tqs, tqa) = args[:18]
        idx = 18
        if use_s_drop:
            ns_ref, ms_ref, mqs_ref = args[idx:idx + 3]
            idx += 3
        if use_r_drop:
            nr_ref, mr_ref, mqr_ref = args[idx:idx + 3]
            idx += 3
        o_ref = args[idx]

        def mlp(x, w1, b1, w2, b2):
            h = jnp.dot(x.astype(COMPUTE_DTYPE), w1[...].astype(COMPUTE_DTYPE),
                        preferred_element_type=jnp.float32) + b1[...]
            h = jax.nn.gelu(h)
            return jnp.dot(h.astype(COMPUTE_DTYPE), w2[...].astype(COMPUTE_DTYPE),
                           preferred_element_type=jnp.float32) + b2[...]

        obs = mlp(s_ref[0], sw1, sb1, sw2, sb2)                    # (T, H)
        act = mlp(a_ref[0], aw1, ab1, aw2, ab2)                    # (T, H)
        # Reward encoder first layer has K == 1: VPU broadcast, not an MXU push.
        rh = jax.nn.gelu(r_ref[0] * rw1[...] + rb1[...])           # (T, H)
        rew = jnp.dot(rh.astype(COMPUTE_DTYPE), rw2[...].astype(COMPUTE_DTYPE),
                      preferred_element_type=jnp.float32) + rb2[...]

        if use_s_drop:
            obs = obs + ns_ref[0]
            m = ms_ref[0]                                          # (T, 1)
            obs = obs * (1.0 - m) + mqs_ref[...] * m
        if use_r_drop:
            rew = rew + nr_ref[0]
            m = mr_ref[0]
            rew = rew * (1.0 - m) + mqr_ref[...] * m

        # Slot-major slab stores (slot0 = reward, slot1 = obs, slot2 = action),
        # each with its own type embedding — no (T, 3H) concat, no relayout.
        o_ref[0, 0] = (rew + tqr[...]).astype(o_ref.dtype)
        o_ref[0, 1] = (obs + tqs[...]).astype(o_ref.dtype)
        o_ref[0, 2] = (act + tqa[...]).astype(o_ref.dtype)

    return kernel


def fused_encoder(params, s_arr, a_arr, r_arr, drop_s=None, drop_r=None):
    B, NT, s_in = s_arr.shape
    a_in = a_arr.shape[-1]
    H = params["hidden"]
    tile = _choose_tile(NT)
    grid = (B, NT // tile)

    tok = lambda i, j: (i, j, 0)
    rep = lambda i, j: (0, 0)

    def wcast(w):
        return w.astype(COMPUTE_DTYPE)

    in_specs = [pl.BlockSpec((1, tile, s_in), tok),
                pl.BlockSpec((1, tile, a_in), tok),
                pl.BlockSpec((1, tile, 1), tok)]
    args = [s_arr, a_arr, r_arr.reshape(B, NT, 1)]

    def add_enc(enc, cast_w1=True):
        for name, cast in (("w1", cast_w1), ("b1", False), ("w2", True), ("b2", False)):
            p = params[enc][name]
            p = wcast(p) if cast else p
            in_specs.append(pl.BlockSpec(p.shape, rep))
            args.append(p)

    add_enc("s_enc")
    add_enc("a_enc")
    add_enc("r_enc", cast_w1=False)   # (1,H) reward first layer stays f32 (VPU path)

    tq = params["type_query"].reshape(3, H)
    for s in range(3):                # slot order: reward, obs, action (matches torch.cat)
        in_specs.append(pl.BlockSpec((1, H), rep))
        args.append(tq[s:s + 1, :])

    use_s = drop_s is not None
    use_r = drop_r is not None
    if use_s:
        noise, mask = drop_s
        in_specs += [pl.BlockSpec((1, tile, H), tok),
                     pl.BlockSpec((1, tile, 1), tok),
                     pl.BlockSpec((1, H), rep)]
        args += [noise, mask, params["mask_query_s"].reshape(1, H)]
    if use_r:
        noise, mask = drop_r
        in_specs += [pl.BlockSpec((1, tile, H), tok),
                     pl.BlockSpec((1, tile, 1), tok),
                     pl.BlockSpec((1, H), rep)]
        args += [noise, mask, params["mask_query_r"].reshape(1, H)]

    grouped = pl.pallas_call(
        make_encoder_kernel(use_s, use_r),
        out_shape=jax.ShapeDtypeStruct((B, 3, NT, H), jnp.float32),
        grid=grid,
        in_specs=in_specs,
        out_specs=pl.BlockSpec((1, 3, tile, H), lambda i, j: (i, 0, j, 0)),
        compiler_params=pltpu.CompilerParams(
            dimension_semantics=("parallel", "parallel"),
            vmem_limit_bytes=VMEM_LIMIT_BYTES),
    )(*args)

    return grouped   # (B, 3, NT, H) slot-major


# ----------------------------------------------------------------------------
# 2) fused causal block + decoders kernel
# ----------------------------------------------------------------------------
def make_causal_decoder_kernel(NT, H, s_out, a_out, temperature):
    scale = 1.0 / math.sqrt(float(H))     # python floats only — never close over
    inv_t = 1.0 / float(temperature)      # jnp arrays (Pallas rejects captured consts)
    neg = -1e30

    def kernel(x_ref,
               wq, bq, wk, bk, wv, bv, wo, bo,
               g1, be1, g2, be2, wf1, bf1, wf2, bf2,
               dsw1, dsb1, dsw2, dsb2,
               daw1, dab1, daw2, dab2,
               drw1, drb1, drw2, drb2,
               wop, bop, o_ref):

        def layer_norm(v, g_ref, b_ref):
            mu = jnp.mean(v, axis=-1, keepdims=True)
            var = jnp.mean((v - mu) ** 2, axis=-1, keepdims=True)
            return (v - mu) * jax.lax.rsqrt(var + 1e-5) * g_ref[...] + b_ref[...]

        def matmul(x, w_ref, b_ref):
            return jnp.dot(x.astype(COMPUTE_DTYPE), w_ref[...].astype(COMPUTE_DTYPE),
                           preferred_element_type=jnp.float32) + b_ref[...]

        # Slot-major sequence: rows [0:NT)=reward, [NT:2NT)=obs, [2NT:3NT)=action.
        x0 = x_ref[0, 0].astype(jnp.float32)
        x1s = x_ref[0, 1].astype(jnp.float32)
        x2s = x_ref[0, 2].astype(jnp.float32)
        x_all = jnp.concatenate([x0, x1s, x2s], axis=0)            # (L, H), L = 3*NT

        # --- pre-LN causal self-attention (single head) ---
        h = layer_norm(x_all, g1, be1)
        k = matmul(h, wk, bk)                                      # (L, H)
        v = matmul(h, wv, bv)                                      # (L, H)
        # Queries only for slot-1 / slot-2 rows: slot-0 causal outputs are
        # never consumed by the decoders (saves 1/3 of attention + FFN work).
        q = matmul(h[NT:, :], wq, bq) * scale                      # (2NT, H)

        # Absolute interleaved positions (reward_t, obs_t, act_t per step t):
        # pos = 3*step + slot.  Built via lane/sublane concats — no div/mod.
        step_k = jax.lax.broadcasted_iota(jnp.int32, (1, NT), 1)
        pos_k = jnp.concatenate([3 * step_k, 3 * step_k + 1, 3 * step_k + 2],
                                axis=1)                            # (1, L)
        step_q = jax.lax.broadcasted_iota(jnp.int32, (NT, 1), 0)
        pos_q = jnp.concatenate([3 * step_q + 1, 3 * step_q + 2],
                                axis=0)                            # (2NT, 1)
        causal = pos_k <= pos_q                                    # (2NT, L)

        s = jax.lax.dot_general(q.astype(COMPUTE_DTYPE), k.astype(COMPUTE_DTYPE),
                                (((1,), (1,)), ((), ())),
                                preferred_element_type=jnp.float32)  # (2NT, L)
        s = jnp.where(causal, s, neg)
        m = jnp.max(s, axis=-1, keepdims=True)
        p = jnp.exp(s - m)
        l = jnp.sum(p, axis=-1, keepdims=True)
        attn = jnp.dot(p.astype(COMPUTE_DTYPE), v.astype(COMPUTE_DTYPE),
                       preferred_element_type=jnp.float32)
        attn = attn * pl.reciprocal(l, approx=True)
        attn = matmul(attn, wo, bo)                                # (2NT, H)

        x_res = x_all[NT:, :]                                      # residual rows
        y1 = x_res + attn

        # --- FFN ---
        h2 = layer_norm(y1, g2, be2)
        ff = jax.nn.gelu(matmul(h2, wf1, bf1))
        y = y1 + matmul(ff, wf2, bf2)                              # (2NT, H)

        # De-interleave is a pair of contiguous sublane slices (no stride-3).
        x_slot1 = y[0:NT, :]        # obs positions    -> action decoder
        x_slot2 = y[NT:2 * NT, :]   # action positions -> state & reward decoders

        def trunk(vv, w1, b1, w2, b2):
            hh = jax.nn.gelu(matmul(vv, w1, b1))
            return vv + matmul(hh, w2, b2)                         # residual MLP

        h_s = trunk(x_slot2, dsw1, dsb1, dsw2, dsb2)
        h_a = trunk(x_slot1, daw1, dab1, daw2, dab2)
        h_r = trunk(x_slot2, drw1, drb1, drw2, drb2)

        # Single lane-dense packed head: [h_s | h_a | h_r] @ blockdiag(wo_s, wo_a, wo_r)
        hcat = jnp.concatenate([h_s, h_a, h_r], axis=-1)           # (NT, 3H)
        out = matmul(hcat, wop, bop)                               # (NT, pack)

        # softmax(./T) applied only to the action columns of the packed slab.
        pack = out.shape[-1]
        col = jax.lax.broadcasted_iota(jnp.int32, (1, pack), 1)
        is_act = jnp.logical_and(col >= s_out, col < s_out + a_out)
        logits = out * inv_t if inv_t != 1.0 else out
        masked = jnp.where(is_act, logits, neg)
        mx = jnp.max(masked, axis=-1, keepdims=True)
        e = jnp.where(is_act, jnp.exp(masked - mx), 0.0)
        probs = e / jnp.sum(e, axis=-1, keepdims=True)
        o_ref[0] = jnp.where(is_act, probs, out).astype(o_ref.dtype)

    return kernel


def fused_causal_decoder(params, grouped, temperature):
    """grouped: (B, 3, NT, H) slot-major encoder output -> packed head slabs."""
    B, _, NT, H = grouped.shape
    cz = params["causal"]

    s_out = params["s_dec"]["wo"].shape[1]
    a_out = params["a_dec"]["wo"].shape[1]
    r_out = params["r_dec"]["wo"].shape[1]
    total = s_out + a_out + r_out
    pack = _round_up(max(total, 128), 128)

    # Block-diagonal packed head -> single unmasked (NT, pack) store.
    wo_pack = jnp.zeros((3 * H, pack), jnp.float32)
    wo_pack = wo_pack.at[0:H, 0:s_out].set(params["s_dec"]["wo"])
    wo_pack = wo_pack.at[H:2 * H, s_out:s_out + a_out].set(params["a_dec"]["wo"])
    wo_pack = wo_pack.at[2 * H:3 * H, s_out + a_out:total].set(params["r_dec"]["wo"])
    bo_pack = jnp.zeros((1, pack), jnp.float32)
    bo_pack = bo_pack.at[:, 0:s_out].set(params["s_dec"]["bo"])
    bo_pack = bo_pack.at[:, s_out:s_out + a_out].set(params["a_dec"]["bo"])
    bo_pack = bo_pack.at[:, s_out + a_out:total].set(params["r_dec"]["bo"])

    def wcast(w):
        return w.astype(COMPUTE_DTYPE)

    rep = lambda b: (0, 0)
    in_specs = [pl.BlockSpec((1, 3, NT, H), lambda b: (b, 0, 0, 0))]
    args = [grouped]

    def add(p, cast):
        p = wcast(p) if cast else p
        in_specs.append(pl.BlockSpec(p.shape, rep))
        args.append(p)

    for name in ("wq", "bq", "wk", "bk", "wv", "bv", "wo", "bo",
                 "ln1_g", "ln1_b", "ln2_g", "ln2_b", "wf1", "bf1", "wf2", "bf2"):
        add(cz[name], name in ("wq", "wk", "wv", "wo", "wf1", "wf2"))
    for dec in ("s_dec", "a_dec", "r_dec"):
        for name in ("w1", "b1", "w2", "b2"):
            add(params[dec][name], name in ("w1", "w2"))
    add(wo_pack, True)
    add(bo_pack, False)

    packed = pl.pallas_call(
        make_causal_decoder_kernel(NT, H, s_out, a_out, temperature),
        out_shape=jax.ShapeDtypeStruct((B, NT, pack), jnp.float32),
        grid=(B,),
        in_specs=in_specs,
        out_specs=pl.BlockSpec((1, NT, pack), lambda b: (b, 0, 0)),
        compiler_params=pltpu.CompilerParams(
            dimension_semantics=("parallel",),
            vmem_limit_bytes=VMEM_LIMIT_BYTES),
    )(*args)

    obs = packed[..., :s_out]
    act = packed[..., s_out:s_out + a_out]
    rew = packed[..., s_out + a_out:total]
    return obs, act, rew


# ----------------------------------------------------------------------------
# Parameter initialization (deterministic, synthetic)
# ----------------------------------------------------------------------------
def _dense(key, din, dout, scale=0.02):
    w = scale * jax.random.normal(key, (din, dout), jnp.float32)
    b = jnp.zeros((1, dout), jnp.float32)
    return w, b


def init_params(key, hidden, s_in, a_in, s_out, a_out, r_out):
    keys = jax.random.split(key, 26)
    ki = iter(keys)
    p = {"hidden": hidden}

    # encoders (2-layer MLP, hidden width = hidden)
    for name, din in (("s_enc", s_in), ("r_enc", 1), ("a_enc", a_in)):
        w1, b1 = _dense(next(ki), din, hidden)
        w2, b2 = _dense(next(ki), hidden, hidden)
        p[name] = dict(w1=w1, b1=b1, w2=w2, b2=b2)

    # decoders (residual MLP + head)
    for name, dout in (("s_dec", s_out), ("a_dec", a_out), ("r_dec", r_out)):
        w1, b1 = _dense(next(ki), hidden, 2 * hidden)
        w2, b2 = _dense(next(ki), 2 * hidden, hidden)
        wo, bo = _dense(next(ki), hidden, dout)
        p[name] = dict(w1=w1, b1=b1, w2=w2, b2=b2, wo=wo, bo=bo)

    # causal block (separate Q/K/V projections — no lane-slicing of a fused qkv)
    wq, bq = _dense(next(ki), hidden, hidden)
    wk, bk = _dense(next(ki), hidden, hidden)
    wv, bv = _dense(next(ki), hidden, hidden)
    wo, bo = _dense(next(ki), hidden, hidden)
    wf1, bf1 = _dense(next(ki), hidden, 4 * hidden)
    wf2, bf2 = _dense(next(ki), 4 * hidden, hidden)
    p["causal"] = dict(
        wq=wq, bq=bq, wk=wk, bk=bk, wv=wv, bv=bv, wo=wo, bo=bo,
        ln1_g=jnp.ones((1, hidden), jnp.float32), ln1_b=jnp.zeros((1, hidden), jnp.float32),
        ln2_g=jnp.ones((1, hidden), jnp.float32), ln2_b=jnp.zeros((1, hidden), jnp.float32),
        wf1=wf1, bf1=bf1, wf2=wf2, bf2=bf2,
    )

    # embeddings (torch.randn equivalents)
    p["type_query"] = jax.random.normal(next(ki), (1, 1, 3, hidden), jnp.float32)
    p["mask_query_s"] = jax.random.normal(next(ki), (1, 1, hidden), jnp.float32)
    p["mask_query_r"] = jax.random.normal(next(ki), (1, 1, hidden), jnp.float32)
    return p


# ----------------------------------------------------------------------------
# RSADecisionModel forward
# ----------------------------------------------------------------------------
def rsa_decision_forward(params, s_arr, a_arr, r_arr, cache=None, need_cache=True,
                         state_dropout=0.0, reward_dropout=0.0, T=1.0,
                         update_memory=True, rng=None):
    # TODO(synk): the reference CausalBlock keeps an internal recurrent memory
    # (cache / update_memory); here `cache` is ignored and `new_cache` is the
    # causal-block input sequence (interleaved reward/obs/action per step).
    B, NT, _ = s_arr.shape
    Ba, NTa, _ = a_arr.shape
    Br, NTr = r_arr.shape[0], r_arr.shape[1]
    assert Br == Ba and Ba == B and NTr == NTa and NT == NTr
    H = params["hidden"]
    if rng is None:
        rng = jax.random.PRNGKey(42)
    keys = jax.random.split(rng, 10)

    # Dropout tensors are only materialized when the python dropout rate is
    # non-zero; at 0.0 the reference math reduces to the plain encoder output.
    drop_s = None
    if state_dropout > 0.0:
        p_noise = 0.5 * state_dropout * jax.random.uniform(keys[0], (B, 1, 1)) * jnp.ones((B, NT, 1))
        p_mask = 0.5 * state_dropout * jax.random.uniform(keys[1], (B, 1, 1)) * jnp.ones((B, NT, 1))
        eps = jax.random.normal(keys[2], (B, NT, H))
        dp_eps = jax.random.bernoulli(keys[3], p_noise).astype(jnp.float32)
        dp_mask = jax.random.bernoulli(keys[4], p_mask).astype(jnp.float32)
        drop_s = (eps * dp_eps, dp_mask)
    drop_r = None
    if reward_dropout > 0.0:
        pr_noise = 0.5 * reward_dropout * jax.random.uniform(keys[5], (B, 1, 1)) * jnp.ones((B, NT, 1))
        pr_mask = 0.5 * reward_dropout * jax.random.uniform(keys[6], (B, 1, 1)) * jnp.ones((B, NT, 1))
        eps_r = jax.random.normal(keys[7], (B, NT, H))
        dpr_eps = jax.random.bernoulli(keys[8], pr_noise).astype(jnp.float32)
        dpr_mask = jax.random.bernoulli(keys[9], pr_mask).astype(jnp.float32)
        drop_r = (eps_r * dpr_eps, dpr_mask)

    # 1) fused encoders + noise/mask + type embedding -> slot-major (B, 3, NT, H)
    grouped = fused_encoder(params, s_arr, a_arr, r_arr, drop_s, drop_r)

    # cache = interleaved causal-block input sequence (reward, obs, action per step)
    if need_cache:
        new_cache = jnp.transpose(grouped, (0, 2, 1, 3)).reshape(B, NT * 3, H)
    else:
        new_cache = None

    # 2+3) fused causal transformer block + state/action/reward decoders
    obs_output, act_output, rew_output = fused_causal_decoder(params, grouped, T)
    return obs_output, act_output, rew_output, new_cache


# ----------------------------------------------------------------------------
# Demo
# ----------------------------------------------------------------------------
if __name__ == "__main__":
    B, NT, HIDDEN = 2, 8, 32
    S_IN, A_IN = 16, 6
    S_OUT, A_OUT, R_OUT = 16, 5, 1

    key = jax.random.PRNGKey(0)
    kp, ks, ka, kr = jax.random.split(key, 4)

    params = init_params(kp, HIDDEN, S_IN, A_IN, S_OUT, A_OUT, R_OUT)

    s_arr = jax.random.normal(ks, (B, NT, S_IN), jnp.float32)
    a_arr = jax.random.normal(ka, (B, NT, A_IN), jnp.float32)
    r_arr = jax.random.normal(kr, (B, NT, 1), jnp.float32)

    obs_out, act_out, rew_out, new_cache = rsa_decision_forward(
        params, s_arr, a_arr, r_arr, cache=None, need_cache=True,
        state_dropout=0.0, reward_dropout=0.0, T=1.0)

    jax.block_until_ready((obs_out, act_out, rew_out, new_cache))

    assert obs_out.shape == (B, NT, S_OUT)
    assert act_out.shape == (B, NT, A_OUT)
    assert rew_out.shape == (B, NT, R_OUT)
    assert new_cache.shape == (B, NT * 3, HIDDEN)
    # action decoder output is a softmax distribution
    assert jnp.allclose(jnp.sum(act_out, axis=-1), 1.0, atol=1e-4)
    assert bool(jnp.all(jnp.isfinite(obs_out)))
    assert bool(jnp.all(jnp.isfinite(rew_out)))

    print("KERNEL_OK")
</pallas_src>

<mosaic_0001>
module attributes {stable_mosaic.version = 11 : i64} {
  func.func @kernel(%arg0: i32, %arg1: i32, %arg2: memref<1x8x16xf32, #tpu.memory_space<vmem>>, %arg3: memref<1x8x6xf32, #tpu.memory_space<vmem>>, %arg4: memref<1x8x1xf32, #tpu.memory_space<vmem>>, %arg5: memref<16x32xbf16, #tpu.memory_space<vmem>>, %arg6: memref<1x32xf32, #tpu.memory_space<vmem>>, %arg7: memref<32x32xbf16, #tpu.memory_space<vmem>>, %arg8: memref<1x32xf32, #tpu.memory_space<vmem>>, %arg9: memref<6x32xbf16, #tpu.memory_space<vmem>>, %arg10: memref<1x32xf32, #tpu.memory_space<vmem>>, %arg11: memref<32x32xbf16, #tpu.memory_space<vmem>>, %arg12: memref<1x32xf32, #tpu.memory_space<vmem>>, %arg13: memref<1x32xf32, #tpu.memory_space<vmem>>, %arg14: memref<1x32xf32, #tpu.memory_space<vmem>>, %arg15: memref<32x32xbf16, #tpu.memory_space<vmem>>, %arg16: memref<1x32xf32, #tpu.memory_space<vmem>>, %arg17: memref<1x32xf32, #tpu.memory_space<vmem>>, %arg18: memref<1x32xf32, #tpu.memory_space<vmem>>, %arg19: memref<1x32xf32, #tpu.memory_space<vmem>>, %arg20: memref<1x3x8x32xf32, #tpu.memory_space<vmem>>) attributes {dimension_semantics = [#tpu.dimension_semantics<parallel>, #tpu.dimension_semantics<parallel>], iteration_bounds = array<i64: 2, 1>, scalar_prefetch = 0 : i64, scratch_operands = 0 : i64, tpu.core_type = #tpu.core_type<tc>, window_params = [{transform_indices = @transform_0, window_bounds = array<i64: 1, 8, 16>}, {transform_indices = @transform_1, window_bounds = array<i64: 1, 8, 6>}, {transform_indices = @transform_2, window_bounds = array<i64: 1, 8, 1>}, {pipeline_mode = #tpu.pipeline_mode<synchronous>, transform_indices = @transform_3, window_bounds = array<i64: 16, 32>}, {pipeline_mode = #tpu.pipeline_mode<synchronous>, transform_indices = @transform_4, window_bounds = array<i64: 1, 32>}, {pipeline_mode = #tpu.pipeline_mode<synchronous>, transform_indices = @transform_5, window_bounds = array<i64: 32, 32>}, {pipeline_mode = #tpu.pipeline_mode<synchronous>, transform_indices = @transform_6, window_bounds = array<i64: 1, 32>}, {pipeline_mode = #tpu.pipeline_mode<synchronous>, transform_indices = @transform_7, window_bounds = array<i64: 6, 32>}, {pipeline_mode = #tpu.pipeline_mode<synchronous>, transform_indices = @transform_8, window_bounds = array<i64: 1, 32>}, {pipeline_mode = #tpu.pipeline_mode<synchronous>, transform_indices = @transform_9, window_bounds = array<i64: 32, 32>}, {pipeline_mode = #tpu.pipeline_mode<synchronous>, transform_indices = @transform_10, window_bounds = array<i64: 1, 32>}, {pipeline_mode = #tpu.pipeline_mode<synchronous>, transform_indices = @transform_11, window_bounds = array<i64: 1, 32>}, {pipeline_mode = #tpu.pipeline_mode<synchronous>, transform_indices = @transform_12, window_bounds = array<i64: 1, 32>}, {pipeline_mode = #tpu.pipeline_mode<synchronous>, transform_indices = @transform_13, window_bounds = array<i64: 32, 32>}, {pipeline_mode = #tpu.pipeline_mode<synchronous>, transform_indices = @transform_14, window_bounds = array<i64: 1, 32>}, {pipeline_mode = #tpu.pipeline_mode<synchronous>, transform_indices = @transform_15, window_bounds = array<i64: 1, 32>}, {pipeline_mode = #tpu.pipeline_mode<synchronous>, transform_indices = @transform_16, window_bounds = array<i64: 1, 32>}, {pipeline_mode = #tpu.pipeline_mode<synchronous>, transform_indices = @transform_17, window_bounds = array<i64: 1, 32>}, {transform_indices = @transform_18, window_bounds = array<i64: 1, 3, 8, 32>}]} {
    %c0 = arith.constant 0 : index
    %c0_0 = arith.constant 0 : index
    %c0_1 = arith.constant 0 : index
    %0 = vector.load %arg2[%c0, %c0_0, %c0_1] : memref<1x8x16xf32, #tpu.memory_space<vmem>>, vector<1x8x16xf32>
    %1 = vector.shape_cast %0 : vector<1x8x16xf32> to vector<8x16xf32>
    %2 = arith.truncf %1 : vector<8x16xf32> to vector<8x16xbf16>
    %c0_2 = arith.constant 0 : index
    %c0_3 = arith.constant 0 : index
    %3 = vector.load %arg5[%c0_2, %c0_3] : memref<16x32xbf16, #tpu.memory_space<vmem>>, vector<16x32xbf16>
    %cst = arith.constant dense<0.000000e+00> : vector<8x32xf32>
    %4 = tpu.matmul %2, %3, %cst {dimension_numbers = #tpu.dot_dimension_numbers<[1], [0], [0], [1], [0, 0, 1, 1], [], []>} : vector<8x16xbf16>, vector<16x32xbf16>, vector<8x32xf32> -> vector<8x32xf32>
    %c0_4 = arith.constant 0 : index
    %c0_5 = arith.constant 0 : index
    %5 = vector.load %arg6[%c0_4, %c0_5] : memref<1x32xf32, #tpu.memory_space<vmem>>, vector<1x32xf32>
    %6 = vector.broadcast %5 : vector<1x32xf32> to vector<8x32xf32>
    %7 = arith.addf %4, %6 : vector<8x32xf32>
    %8 = arith.mulf %7, %7 : vector<8x32xf32>
    %9 = arith.mulf %7, %8 : vector<8x32xf32>
    %cst_6 = arith.constant 4.471500e-02 : f32
    %10 = vector.broadcast %cst_6 : f32 to vector<8x32xf32>
    %11 = arith.mulf %10, %9 : vector<8x32xf32>
    %12 = arith.addf %7, %11 : vector<8x32xf32>
    %cst_7 = arith.constant 0.797884583 : f32
    %13 = vector.broadcast %cst_7 : f32 to vector<8x32xf32>
    %14 = arith.mulf %13, %12 : vector<8x32xf32>
    %15 = math.tanh %14 : vector<8x32xf32>
    %cst_8 = arith.constant 1.000000e+00 : f32
    %16 = vector.broadcast %cst_8 : f32 to vector<8x32xf32>
    %17 = arith.addf %16, %15 : vector<8x32xf32>
    %cst_9 = arith.constant 5.000000e-01 : f32
    %18 = vector.broadcast %cst_9 : f32 to vector<8x32xf32>
    %19 = arith.mulf %18, %17 : vector<8x32xf32>
    %20 = arith.mulf %7, %19 : vector<8x32xf32>
    %21 = arith.truncf %20 : vector<8x32xf32> to vector<8x32xbf16>
    %c0_10 = arith.constant 0 : index
    %c0_11 = arith.constant 0 : index
    %22 = vector.load %arg7[%c0_10, %c0_11] : memref<32x32xbf16, #tpu.memory_space<vmem>>, vector<32x32xbf16>
    %cst_12 = arith.constant dense<0.000000e+00> : vector<8x32xf32>
    %23 = tpu.matmul %21, %22, %cst_12 {dimension_numbers = #tpu.dot_dimension_numbers<[1], [0], [0], [1], [0, 0, 1, 1], [], []>} : vector<8x32xbf16>, vector<32x32xbf16>, vector<8x32xf32> -> vector<8x32xf32>
    %c0_13 = arith.constant 0 : index
    %c0_14 = arith.constant 0 : index
    %24 = vector.load %arg8[%c0_13, %c0_14] : memref<1x32xf32, #tpu.memory_space<vmem>>, vector<1x32xf32>
    %25 = vector.broadcast %24 : vector<1x32xf32> to vector<8x32xf32>
    %26 = arith.addf %23, %25 : vector<8x32xf32>
    %c0_15 = arith.constant 0 : index
    %c0_16 = arith.constant 0 : index
    %c0_17 = arith.constant 0 : index
    %27 = vector.load %arg3[%c0_15, %c0_16, %c0_17] : memref<1x8x6xf32, #tpu.memory_space<vmem>>, vector<1x8x6xf32>
    %28 = vector.shape_cast %27 : vector<1x8x6xf32> to vector<8x6xf32>
    %29 = arith.truncf %28 : vector<8x6xf32> to vector<8x6xbf16>
    %c0_18 = arith.constant 0 : index
    %c0_19 = arith.constant 0 : index
    %30 = vector.load %arg9[%c0_18, %c0_19] : memref<6x32xbf16, #tpu.memory_space<vmem>>, vector<6x32xbf16>
    %cst_20 = arith.constant dense<0.000000e+00> : vector<8x32xf32>
    %31 = tpu.matmul %29, %30, %cst_20 {dimension_numbers = #tpu.dot_dimension_numbers<[1], [0], [0], [1], [0, 0, 1, 1], [], []>} : vector<8x6xbf16>, vector<6x32xbf16>, vector<8x32xf32> -> vector<8x32xf32>
    %c0_21 = arith.constant 0 : index
    %c0_22 = arith.constant 0 : index
    %32 = vector.load %arg10[%c0_21, %c0_22] : memref<1x32xf32, #tpu.memory_space<vmem>>, vector<1x32xf32>
    %33 = vector.broadcast %32 : vector<1x32xf32> to vector<8x32xf32>
    %34 = arith.addf %31, %33 : vector<8x32xf32>
    %35 = arith.mulf %34, %34 : vector<8x32xf32>
    %36 = arith.mulf %34, %35 : vector<8x32xf32>
    %cst_23 = arith.constant 4.471500e-02 : f32
    %37 = vector.broadcast %cst_23 : f32 to vector<8x32xf32>
    %38 = arith.mulf %37, %36 : vector<8x32xf32>
    %39 = arith.addf %34, %38 : vector<8x32xf32>
    %cst_24 = arith.constant 0.797884583 : f32
    %40 = vector.broadcast %cst_24 : f32 to vector<8x32xf32>
    %41 = arith.mulf %40, %39 : vector<8x32xf32>
    %42 = math.tanh %41 : vector<8x32xf32>
    %cst_25 = arith.constant 1.000000e+00 : f32
    %43 = vector.broadcast %cst_25 : f32 to vector<8x32xf32>
    %44 = arith.addf %43, %42 : vector<8x32xf32>
    %cst_26 = arith.constant 5.000000e-01 : f32
    %45 = vector.broadcast %cst_26 : f32 to vector<8x32xf32>
    %46 = arith.mulf %45, %44 : vector<8x32xf32>
    %47 = arith.mulf %34, %46 : vector<8x32xf32>
    %48 = arith.truncf %47 : vector<8x32xf32> to vector<8x32xbf16>
    %c0_27 = arith.constant 0 : index
    %c0_28 = arith.constant 0 : index
    %49 = vector.load %arg11[%c0_27, %c0_28] : memref<32x32xbf16, #tpu.memory_space<vmem>>, vector<32x32xbf16>
    %cst_29 = arith.constant dense<0.000000e+00> : vector<8x32xf32>
    %50 = tpu.matmul %48, %49, %cst_29 {dimension_numbers = #tpu.dot_dimension_numbers<[1], [0], [0], [1], [0, 0, 1, 1], [], []>} : vector<8x32xbf16>, vector<32x32xbf16>, vector<8x32xf32> -> vector<8x32xf32>
    %c0_30 = arith.constant 0 : index
    %c0_31 = arith.constant 0 : index
    %51 = vector.load %arg12[%c0_30, %c0_31] : memref<1x32xf32, #tpu.memory_space<vmem>>, vector<1x32xf32>
    %52 = vector.broadcast %51 : vector<1x32xf32> to vector<8x32xf32>
    %53 = arith.addf %50, %52 : vector<8x32xf32>
    %c0_32 = arith.constant 0 : index
    %c0_33 = arith.constant 0 : index
    %c0_34 = arith.constant 0 : index
    %54 = vector.load %arg4[%c0_32, %c0_33, %c0_34] : memref<1x8x1xf32, #tpu.memory_space<vmem>>, vector<1x8x1xf32>
    %55 = vector.shape_cast %54 : vector<1x8x1xf32> to vector<8x1xf32>
    %c0_35 = arith.constant 0 : index
    %c0_36 = arith.constant 0 : index
    %56 = vector.load %arg13[%c0_35, %c0_36] : memref<1x32xf32, #tpu.memory_space<vmem>>, vector<1x32xf32>
    %57 = vector.broadcast %55 : vector<8x1xf32> to vector<8x32xf32>
    %58 = vector.broadcast %56 : vector<1x32xf32> to vector<8x32xf32>
    %59 = arith.mulf %57, %58 : vector<8x32xf32>
    %c0_37 = arith.constant 0 : index
    %c0_38 = arith.constant 0 : index
    %60 = vector.load %arg14[%c0_37, %c0_38] : memref<1x32xf32, #tpu.memory_space<vmem>>, vector<1x32xf32>
    %61 = vector.broadcast %60 : vector<1x32xf32> to vector<8x32xf32>
    %62 = arith.addf %59, %61 : vector<8x32xf32>
    %63 = arith.mulf %62, %62 : vector<8x32xf32>
    %64 = arith.mulf %62, %63 : vector<8x32xf32>
    %cst_39 = arith.constant 4.471500e-02 : f32
    %65 = vector.broadcast %cst_39 : f32 to vector<8x32xf32>
    %66 = arith.mulf %65, %64 : vector<8x32xf32>
    %67 = arith.addf %62, %66 : vector<8x32xf32>
    %cst_40 = arith.constant 0.797884583 : f32
    %68 = vector.broadcast %cst_40 : f32 to vector<8x32xf32>
    %69 = arith.mulf %68, %67 : vector<8x32xf32>
    %70 = math.tanh %69 : vector<8x32xf32>
    %cst_41 = arith.constant 1.000000e+00 : f32
    %71 = vector.broadcast %cst_41 : f32 to vector<8x32xf32>
    %72 = arith.addf %71, %70 : vector<8x32xf32>
    %cst_42 = arith.constant 5.000000e-01 : f32
    %73 = vector.broadcast %cst_42 : f32 to vector<8x32xf32>
    %74 = arith.mulf %73, %72 : vector<8x32xf32>
    %75 = arith.mulf %62, %74 : vector<8x32xf32>
    %76 = arith.truncf %75 : vector<8x32xf32> to vector<8x32xbf16>
    %c0_43 = arith.constant 0 : index
    %c0_44 = arith.constant 0 : index
    %77 = vector.load %arg15[%c0_43, %c0_44] : memref<32x32xbf16, #tpu.memory_space<vmem>>, vector<32x32xbf16>
    %cst_45 = arith.constant dense<0.000000e+00> : vector<8x32xf32>
    %78 = tpu.matmul %76, %77, %cst_45 {dimension_numbers = #tpu.dot_dimension_numbers<[1], [0], [0], [1], [0, 0, 1, 1], [], []>} : vector<8x32xbf16>, vector<32x32xbf16>, vector<8x32xf32> -> vector<8x32xf32>
    %c0_46 = arith.constant 0 : index
    %c0_47 = arith.constant 0 : index
    %79 = vector.load %arg16[%c0_46, %c0_47] : memref<1x32xf32, #tpu.memory_space<vmem>>, vector<1x32xf32>
    %80 = vector.broadcast %79 : vector<1x32xf32> to vector<8x32xf32>
    %81 = arith.addf %78, %80 : vector<8x32xf32>
    %c0_48 = arith.constant 0 : index
    %c0_49 = arith.constant 0 : index
    %82 = vector.load %arg17[%c0_48, %c0_49] : memref<1x32xf32, #tpu.memory_space<vmem>>, vector<1x32xf32>
    %83 = vector.broadcast %82 : vector<1x32xf32> to vector<8x32xf32>
    %84 = arith.addf %81, %83 : vector<8x32xf32>
    %c0_50 = arith.constant 0 : index
    %c0_51 = arith.constant 0 : index
    %c0_52 = arith.constant 0 : index
    %c0_53 = arith.constant 0 : index
    %85 = vector.load %arg20[%c0_50, %c0_51, %c0_52, %c0_53] : memref<1x3x8x32xf32, #tpu.memory_space<vmem>>, vector<1x1x8x32xf32>
    %86 = vector.shape_cast %85 : vector<1x1x8x32xf32> to vector<8x32xf32>
    %87 = vector.shape_cast %84 : vector<8x32xf32> to vector<1x1x8x32xf32>
    tpu.vector_store %arg20[%c0_50, %c0_51, %c0_52, %c0_53], %87 {strides = array<i32>} : memref<1x3x8x32xf32, #tpu.memory_space<vmem>>, vector<1x1x8x32xf32>,
    %c0_54 = arith.constant 0 : index
    %c0_55 = arith.constant 0 : index
    %88 = vector.load %arg18[%c0_54, %c0_55] : memref<1x32xf32, #tpu.memory_space<vmem>>, vector<1x32xf32>
    %89 = vector.broadcast %88 : vector<1x32xf32> to vector<8x32xf32>
    %90 = arith.addf %26, %89 : vector<8x32xf32>
    %c0_56 = arith.constant 0 : index
    %c1 = arith.constant 1 : index
    %c0_57 = arith.constant 0 : index
    %c0_58 = arith.constant 0 : index
    %91 = vector.load %arg20[%c0_56, %c1, %c0_57, %c0_58] : memref<1x3x8x32xf32, #tpu.memory_space<vmem>>, vector<1x1x8x32xf32>
    %92 = vector.shape_cast %91 : vector<1x1x8x32xf32> to vector<8x32xf32>
    %93 = vector.shape_cast %90 : vector<8x32xf32> to vector<1x1x8x32xf32>
    tpu.vector_store %arg20[%c0_56, %c1, %c0_57, %c0_58], %93 {strides = array<i32>} : memref<1x3x8x32xf32, #tpu.memory_space<vmem>>, vector<1x1x8x32xf32>,
    %c0_59 = arith.constant 0 : index
    %c0_60 = arith.constant 0 : index
    %94 = vector.load %arg19[%c0_59, %c0_60] : memref<1x32xf32, #tpu.memory_space<vmem>>, vector<1x32xf32>
    %95 = vector.broadcast %94 : vector<1x32xf32> to vector<8x32xf32>
    %96 = arith.addf %53, %95 : vector<8x32xf32>
    %c0_61 = arith.constant 0 : index
    %c2 = arith.constant 2 : index
    %c0_62 = arith.constant 0 : index
    %c0_63 = arith.constant 0 : index
    %97 = vector.load %arg20[%c0_61, %c2, %c0_62, %c0_63] : memref<1x3x8x32xf32, #tpu.memory_space<vmem>>, vector<1x1x8x32xf32>
    %98 = vector.shape_cast %97 : vector<1x1x8x32xf32> to vector<8x32xf32>
    %99 = vector.shape_cast %96 : vector<8x32xf32> to vector<1x1x8x32xf32>
    tpu.vector_store %arg20[%c0_61, %c2, %c0_62, %c0_63], %99 {strides = array<i32>} : memref<1x3x8x32xf32, #tpu.memory_space<vmem>>, vector<1x1x8x32xf32>,
    return
  }
  func.func @transform_0(%arg0: i32, %arg1: i32) -> (i32, i32, i32) {
    %c0_i32 = arith.constant 0 : i32
    %c0_i32_0 = arith.constant 0 : i32
    return %arg0, %arg1, %c0_i32 : i32, i32, i32
  }
  func.func @transform_1(%arg0: i32, %arg1: i32) -> (i32, i32, i32) {
    %c0_i32 = arith.constant 0 : i32
    %c0_i32_0 = arith.constant 0 : i32
    return %arg0, %arg1, %c0_i32 : i32, i32, i32
  }
  func.func @transform_2(%arg0: i32, %arg1: i32) -> (i32, i32, i32) {
    %c0_i32 = arith.constant 0 : i32
    %c0_i32_0 = arith.constant 0 : i32
    return %arg0, %arg1, %c0_i32 : i32, i32, i32
  }
  func.func @transform_3(%arg0: i32, %arg1: i32) -> (i32, i32) {
    %c0_i32 = arith.constant 0 : i32
    %c0_i32_0 = arith.constant 0 : i32
    %c0_i32_1 = arith.constant 0 : i32
    return %c0_i32, %c0_i32_0 : i32, i32
  }
  func.func @transform_4(%arg0: i32, %arg1: i32) -> (i32, i32) {
    %c0_i32 = arith.constant 0 : i32
    %c0_i32_0 = arith.constant 0 : i32
    %c0_i32_1 = arith.constant 0 : i32
    return %c0_i32, %c0_i32_0 : i32, i32
  }
  func.func @transform_5(%arg0: i32, %arg1: i32) -> (i32, i32) {
    %c0_i32 = arith.constant 0 : i32
    %c0_i32_0 = arith.constant 0 : i32
    %c0_i32_1 = arith.constant 0 : i32
    return %c0_i32, %c0_i32_0 : i32, i32
  }
  func.func @transform_6(%arg0: i32, %arg1: i32) -> (i32, i32) {
    %c0_i32 = arith.constant 0 : i32
    %c0_i32_0 = arith.constant 0 : i32
    %c0_i32_1 = arith.constant 0 : i32
    return %c0_i32, %c0_i32_0 : i32, i32
  }
  func.func @transform_7(%arg0: i32, %arg1: i32) -> (i32, i32) {
    %c0_i32 = arith.constant 0 : i32
    %c0_i32_0 = arith.constant 0 : i32
    %c0_i32_1 = arith.constant 0 : i32
    return %c0_i32, %c0_i32_0 : i32, i32
  }
  func.func @transform_8(%arg0: i32, %arg1: i32) -> (i32, i32) {
    %c0_i32 = arith.constant 0 : i32
    %c0_i32_0 = arith.constant 0 : i32
    %c0_i32_1 = arith.constant 0 : i32
    return %c0_i32, %c0_i32_0 : i32, i32
  }
  func.func @transform_9(%arg0: i32, %arg1: i32) -> (i32, i32) {
    %c0_i32 = arith.constant 0 : i32
    %c0_i32_0 = arith.constant 0 : i32
    %c0_i32_1 = arith.constant 0 : i32
    return %c0_i32, %c0_i32_0 : i32, i32
  }
  func.func @transform_10(%arg0: i32, %arg1: i32) -> (i32, i32) {
    %c0_i32 = arith.constant 0 : i32
    %c0_i32_0 = arith.constant 0 : i32
    %c0_i32_1 = arith.constant 0 : i32
    return %c0_i32, %c0_i32_0 : i32, i32
  }
  func.func @transform_11(%arg0: i32, %arg1: i32) -> (i32, i32) {
    %c0_i32 = arith.constant 0 : i32
    %c0_i32_0 = arith.constant 0 : i32
    %c0_i32_1 = arith.constant 0 : i32
    return %c0_i32, %c0_i32_0 : i32, i32
  }
  func.func @transform_12(%arg0: i32, %arg1: i32) -> (i32, i32) {
    %c0_i32 = arith.constant 0 : i32
    %c0_i32_0 = arith.constant 0 : i32
    %c0_i32_1 = arith.constant 0 : i32
    return %c0_i32, %c0_i32_0 : i32, i32
  }
  func.func @transform_13(%arg0: i32, %arg1: i32) -> (i32, i32) {
    %c0_i32 = arith.constant 0 : i32
    %c0_i32_0 = arith.constant 0 : i32
    %c0_i32_1 = arith.constant 0 : i32
    return %c0_i32, %c0_i32_0 : i32, i32
  }
  func.func @transform_14(%arg0: i32, %arg1: i32) -> (i32, i32) {
    %c0_i32 = arith.constant 0 : i32
    %c0_i32_0 = arith.constant 0 : i32
    %c0_i32_1 = arith.constant 0 : i32
    return %c0_i32, %c0_i32_0 : i32, i32
  }
  func.func @transform_15(%arg0: i32, %arg1: i32) -> (i32, i32) {
    %c0_i32 = arith.constant 0 : i32
    %c0_i32_0 = arith.constant 0 : i32
    %c0_i32_1 = arith.constant 0 : i32
    return %c0_i32, %c0_i32_0 : i32, i32
  }
  func.func @transform_16(%arg0: i32, %arg1: i32) -> (i32, i32) {
    %c0_i32 = arith.constant 0 : i32
    %c0_i32_0 = arith.constant 0 : i32
    %c0_i32_1 = arith.constant 0 : i32
    return %c0_i32, %c0_i32_0 : i32, i32
  }
  func.func @transform_17(%arg0: i32, %arg1: i32) -> (i32, i32) {
    %c0_i32 = arith.constant 0 : i32
    %c0_i32_0 = arith.constant 0 : i32
    %c0_i32_1 = arith.constant 0 : i32
    return %c0_i32, %c0_i32_0 : i32, i32
  }
  func.func @transform_18(%arg0: i32, %arg1: i32) -> (i32, i32, i32, i32) {
    %c0_i32 = arith.constant 0 : i32
    %c0_i32_0 = arith.constant 0 : i32
    %c0_i32_1 = arith.constant 0 : i32
    return %arg0, %c0_i32, %arg1, %c0_i32_0 : i32, i32, i32, i32
  }
}

</mosaic_0001>

<llo_original>
// kernel: tpu_custom_call.1
$region0: #{tpu_custom_call.1}
  #allocation0 [shape = 'u32[]', space=smem, size = 0x4, offset = 0x4, fixed_abs, tag = 'smem constant byte address 0x4 - core index']
  #allocation1 [shape = 'u32[72,128]{1,0:T(1,128)}', space=vmem, size = 0x9000, scoped, tag = 'internal scratch']
  %s0 = inlined_call_operand.vmem [shape: f32[2,8,16], index: 0, kind: input, shape index: {}]
  %s1 = inlined_call_operand.vmem [shape: f32[2,8,6], index: 1, kind: input, shape index: {}]
  %s2 = inlined_call_operand.vmem [shape: f32[2,8,1], index: 2, kind: input, shape index: {}]
  %s3 = inlined_call_operand.hbm [shape: bf16[16,32], index: 3, kind: input, shape index: {}]
  %s4 = inlined_call_operand.hbm [shape: f32[1,32], index: 4, kind: input, shape index: {}]
  %s5 = inlined_call_operand.vmem [shape: bf16[32,32], index: 5, kind: input, shape index: {}]
  %s6 = inlined_call_operand.vmem [shape: f32[1,32], index: 6, kind: input, shape index: {}]
  %s7 = inlined_call_operand.hbm [shape: bf16[6,32], index: 7, kind: input, shape index: {}]
  %s8 = inlined_call_operand.vmem [shape: f32[1,32], index: 8, kind: input, shape index: {}]
  %s9 = inlined_call_operand.vmem [shape: bf16[32,32], index: 9, kind: input, shape index: {}]
  %s10 = inlined_call_operand.vmem [shape: f32[1,32], index: 10, kind: input, shape index: {}]
  %s11 = inlined_call_operand.vmem [shape: f32[1,32], index: 11, kind: input, shape index: {}]
  %s12 = inlined_call_operand.vmem [shape: f32[1,32], index: 12, kind: input, shape index: {}]
  %s13 = inlined_call_operand.hbm [shape: bf16[32,32], index: 13, kind: input, shape index: {}]
  %s14 = inlined_call_operand.vmem [shape: f32[1,32], index: 14, kind: input, shape index: {}]
  %s15 = inlined_call_operand.vmem [shape: f32[1,32], index: 15, kind: input, shape index: {}]
  %s16 = inlined_call_operand.vmem [shape: f32[1,32], index: 16, kind: input, shape index: {}]
  %s17 = inlined_call_operand.vmem [shape: f32[1,32], index: 17, kind: input, shape index: {}]
  %s18 = inlined_call_operand.hbm [shape: f32[2,3,8,32], index: 18, kind: output, shape index: {}]
  %s19 = sld [smem:[#allocation0]]
  $region121: #{tpu_custom_call.1} parent=0
    _
  %s21 = ssub.s32 1, %s19
  %s22 = scalar_select 0, %s21, %s19
  $region1: #{tpu_custom_call.1} parent=0
    #allocation2 [shape = 'u8[4096]{0}', space=vmem, size = 0x1000, scoped, tag = 'input window, operand 3, single buffered']
    #allocation3 [shape = 's32[2]{0}', space=sflag, size = 0x8, scoped, tag = 'scoped memory for tpu_custom_call.1']
    #allocation4 [shape = 's32[2]{0}', space=sflag, size = 0x8, scoped, tag = 'scoped memory for tpu_custom_call.1']
    #allocation5 [shape = 'u8[512]{0}', space=vmem, size = 0x400, scoped, tag = 'input window, operand 4, single buffered']
    #allocation6 [shape = 's32[1]{0}', space=sflag, size = 0x4, scoped, tag = 'scoped memory for tpu_custom_call.1']
    #allocation7 [shape = 'u8[2048]{0}', space=vmem, size = 0x800, scoped, tag = 'input window, operand 7, single buffered']
    #allocation8 [shape = 'u8[8192]{0}', space=vmem, size = 0x2000, scoped, tag = 'input window, operand 13, single buffered']
    #allocation9 [shape = 's32[1]{0}', space=sflag, size = 0x4, scoped, tag = 'scoped memory for tpu_custom_call.1']
    #allocation10 [shape = 'u8[24576]{0}', space=vmem, size = 0x6000, scoped, tag = 'output window, operand 0']
    %23 = vsyncpa [#allocation3], 0
    %24 = vsyncpa [#allocation6], 0
    %25 = vsyncpa [#allocation9], 0
    %26 = vsyncpa [#allocation4], 0
    %s27 = scalar_lea.sflag [#allocation4], 1
    %28 = vsyncpa %s27, 0
    loop: start=0, step=1, limit=4
    $region2: #{tpu_custom_call.1} parent=1 // loop_pre_header
      _
    $region3: #{tpu_custom_call.1} parent=1 // loop_header
      %s30 = sphi 0, %s34
      %p31 = scmp.ge.s32.totalorder %s30, 4
      %s37 = sphi 0, %s49
      %s38 = sphi 0, %s45
      %s39 = sphi 0, %s37
      %s40 = sphi 0, %s38
      %s41 = sphi 0, %s39
      %s42 = sphi 0, %s40
      %s54 = sphi 0, %s56
      %s57 = sphi 0, %s54
      %s58 = sphi 0, %s57
      %s74 = sphi 0, %s58
      %s82 = sphi 0, %s84
      %s85 = sphi 0, %s82
      %s86 = sphi 0, %s85
      %s102 = sphi 0, %s86
      %s110 = sphi 0, %s112
      %s113 = sphi 0, %s110
      %s114 = sphi 0, %s113
      %s130 = sphi 0, %s114
      %s134 = sphi 0, %s134
      %s136 = sphi 0, %s134
      %s137 = sphi 0, %s136
      %s151 = sphi 0, %s137
      %s155 = sphi 0, %s155
      %s157 = sphi 0, %s155
      %s158 = sphi 0, %s157
      %s172 = sphi 0, %s158
      %s176 = sphi 0, %s176
      %s178 = sphi 0, %s176
      %s179 = sphi 0, %s178
      %s193 = sphi 0, %s179
      %s197 = sphi 0, %s197
      %s199 = sphi 0, %s197
      %s200 = sphi 0, %s199
      %s214 = sphi 0, %s200
      %s218 = sphi 0, %s218
      %s220 = sphi 0, %s218
      %s221 = sphi 0, %s220
      %s235 = sphi 0, %s221
      %s239 = sphi 0, %s239
      %s241 = sphi 0, %s239
      %s242 = sphi 0, %s241
      %s256 = sphi 0, %s242
      %s260 = sphi 0, %s260
      %s262 = sphi 0, %s260
      %s263 = sphi 0, %s262
      %s277 = sphi 0, %s263
      %s281 = sphi 0, %s281
      %s283 = sphi 0, %s281
      %s284 = sphi 0, %s283
      %s298 = sphi 0, %s284
      %s302 = sphi 0, %s302
      %s304 = sphi 0, %s302
      %s305 = sphi 0, %s304
      %s319 = sphi 0, %s305
      %s323 = sphi 0, %s323
      %s325 = sphi 0, %s323
      %s326 = sphi 0, %s325
      %s340 = sphi 0, %s326
      %s344 = sphi 0, %s344
      %s346 = sphi 0, %s344
      %s347 = sphi 0, %s346
      %s361 = sphi 0, %s347
      %s365 = sphi 0, %s365
      %s367 = sphi 0, %s365
      %s368 = sphi 0, %s367
      %s382 = sphi 0, %s368
      %s386 = sphi 0, %s386
      %s388 = sphi 0, %s386
      %s389 = sphi 0, %s388
      %s403 = sphi 0, %s389
      %s407 = sphi 0, %s407
      %s409 = sphi 0, %s407
      %s410 = sphi 0, %s409
      %s424 = sphi 0, %s410
      %s428 = sphi 0, %s428
      %s430 = sphi 0, %s428
      %s431 = sphi 0, %s430
      %s445 = sphi 0, %s431
      %s453 = sphi 0, %s455
      %s456 = sphi 0, %s453
      %s457 = sphi 0, %s456
      %s473 = sphi 0, %s457
    $region4: #{tpu_custom_call.1} parent=1 // loop_header_branch
      %33 = sbr.rel (%p31) target = $region8
    $region5: #{tpu_custom_call.1} parent=1 // loop_body
      %s35 = ssub.s32 %s30, 1
      %s36 = ssub.s32 %s30, 2
      %s43 = sadd.s32 1, %s38
      %p44 = scmp.ge.s32.totalorder %s43, 1
      %s45 = scalar_select %p44, 0, %s43
      %s46 = sadd.s32 1, %s37
      %s47 = scalar_select %p44, %s46, %s37
      %p48 = scmp.ge.s32.totalorder %s47, 2
      %s49 = scalar_select %p48, 0, %s47
      %s50 = ssub.s32 %s37, %s49
      %s51 = ssub.s32 %s38, %s45
      %s52 = sor.u32 %s50, %s51
      %p53 = scmp.eq.s32.totalorder %s52, 0
      %s55 = sadd.s32 %s54, 1
      %s56 = scalar_select %p53, %s54, %s55
      %p59 = pneg %p53
      %p60 = scmp.eq.s32.totalorder %s30, 1
      %p61 = por %p59, %p60
      %p62 = scmp.ne.s32.totalorder %s54, %s57
      %p63 = scmp.eq.s32.totalorder %s30, 0
      %p64 = por %p62, %p63
      %p65 = scmp.ne.s32.totalorder %s54, %s57
      %p66 = scmp.eq.s32.totalorder %s35, 1
      %p67 = por %p65, %p66
      %p68 = scmp.ne.s32.totalorder %s57, %s58
      %p69 = scmp.eq.s32.totalorder %s35, 0
      %p70 = por %p68, %p69
      %p71 = scmp.ne.s32.totalorder %s57, %s58
      %p72 = scmp.eq.s32.totalorder %s36, 1
      %p73 = por %p71, %p72
      %p75 = scmp.ne.s32.totalorder %s58, %s74
      %p76 = scmp.eq.s32.totalorder %s36, 0
      %p77 = por %p75, %p76
      %s78 = ssub.s32 %s37, %s49
      %s79 = ssub.s32 %s38, %s45
      %s80 = sor.u32 %s78, %s79
      %p81 = scmp.eq.s32.totalorder %s80, 0
      %s83 = sadd.s32 %s82, 1
      %s84 = scalar_select %p81, %s82, %s83
      %p87 = pneg %p81
      %p88 = scmp.eq.s32.totalorder %s30, 1
      %p89 = por %p87, %p88
      %p90 = scmp.ne.s32.totalorder %s82, %s85
      %p91 = scmp.eq.s32.totalorder %s30, 0
      %p92 = por %p90, %p91
      %p93 = scmp.ne.s32.totalorder %s82, %s85
      %p94 = scmp.eq.s32.totalorder %s35, 1
      %p95 = por %p93, %p94
      %p96 = scmp.ne.s32.totalorder %s85, %s86
      %p97 = scmp.eq.s32.totalorder %s35, 0
      %p98 = por %p96, %p97
      %p99 = scmp.ne.s32.totalorder %s85, %s86
      %p100 = scmp.eq.s32.totalorder %s36, 1
      %p101 = por %p99, %p100
      %p103 = scmp.ne.s32.totalorder %s86, %s102
      %p104 = scmp.eq.s32.totalorder %s36, 0
      %p105 = por %p103, %p104
      %s106 = ssub.s32 %s37, %s49
      %s107 = ssub.s32 %s38, %s45
      %s108 = sor.u32 %s106, %s107
      %p109 = scmp.eq.s32.totalorder %s108, 0
      %s111 = sadd.s32 %s110, 1
      %s112 = scalar_select %p109, %s110, %s111
      %p115 = pneg %p109
      %p116 = scmp.eq.s32.totalorder %s30, 1
      %p117 = por %p115, %p116
      %p118 = scmp.ne.s32.totalorder %s110, %s113
      %p119 = scmp.eq.s32.totalorder %s30, 0
      %p120 = por %p118, %p119
      %p121 = scmp.ne.s32.totalorder %s110, %s113
      %p122 = scmp.eq.s32.totalorder %s35, 1
      %p123 = por %p121, %p122
      %p124 = scmp.ne.s32.totalorder %s113, %s114
      %p125 = scmp.eq.s32.totalorder %s35, 0
      %p126 = por %p124, %p125
      %p127 = scmp.ne.s32.totalorder %s113, %s114
      %p128 = scmp.eq.s32.totalorder %s36, 1
      %p129 = por %p127, %p128
      %p131 = scmp.ne.s32.totalorder %s114, %s130
      %p132 = scmp.eq.s32.totalorder %s36, 0
      %p133 = por %p131, %p132
      %s135 = sadd.s32 %s134, 1
      %p138 = scmp.eq.s32.totalorder %s30, 1
      %p139 = scmp.ne.s32.totalorder %s134, %s136
      %p140 = scmp.eq.s32.totalorder %s30, 0
      %p141 = por %p139, %p140
      %p142 = scmp.ne.s32.totalorder %s134, %s136
      %p143 = scmp.eq.s32.totalorder %s35, 1
      %p144 = por %p142, %p143
      %p145 = scmp.ne.s32.totalorder %s136, %s137
      %p146 = scmp.eq.s32.totalorder %s35, 0
      %p147 = por %p145, %p146
      %p148 = scmp.ne.s32.totalorder %s136, %s137
      %p149 = scmp.eq.s32.totalorder %s36, 1
      %p150 = por %p148, %p149
      %p152 = scmp.ne.s32.totalorder %s137, %s151
      %p153 = scmp.eq.s32.totalorder %s36, 0
      %p154 = por %p152, %p153
      %s156 = sadd.s32 %s155, 1
      %p159 = scmp.eq.s32.totalorder %s30, 1
      %p160 = scmp.ne.s32.totalorder %s155, %s157
      %p161 = scmp.eq.s32.totalorder %s30, 0
      %p162 = por %p160, %p161
      %p163 = scmp.ne.s32.totalorder %s155, %s157
      %p164 = scmp.eq.s32.totalorder %s35, 1
      %p165 = por %p163, %p164
      %p166 = scmp.ne.s32.totalorder %s157, %s158
      %p167 = scmp.eq.s32.totalorder %s35, 0
      %p168 = por %p166, %p167
      %p169 = scmp.ne.s32.totalorder %s157, %s158
      %p170 = scmp.eq.s32.totalorder %s36, 1
      %p171 = por %p169, %p170
      %p173 = scmp.ne.s32.totalorder %s158, %s172
      %p174 = scmp.eq.s32.totalorder %s36, 0
      %p175 = por %p173, %p174
      %s177 = sadd.s32 %s176, 1
      %p180 = scmp.eq.s32.totalorder %s30, 1
      %p181 = scmp.ne.s32.totalorder %s176, %s178
      %p182 = scmp.eq.s32.totalorder %s30, 0
      %p183 = por %p181, %p182
      %p184 = scmp.ne.s32.totalorder %s176, %s178
      %p185 = scmp.eq.s32.totalorder %s35, 1
      %p186 = por %p184, %p185
      %p187 = scmp.ne.s32.totalorder %s178, %s179
      %p188 = scmp.eq.s32.totalorder %s35, 0
      %p189 = por %p187, %p188
      %p190 = scmp.ne.s32.totalorder %s178, %s179
      %p191 = scmp.eq.s32.totalorder %s36, 1
      %p192 = por %p190, %p191
      %p194 = scmp.ne.s32.totalorder %s179, %s193
      %p195 = scmp.eq.s32.totalorder %s36, 0
      %p196 = por %p194, %p195
      %s198 = sadd.s32 %s197, 1
      %p201 = scmp.eq.s32.totalorder %s30, 1
      %p202 = scmp.ne.s32.totalorder %s197, %s199
      %p203 = scmp.eq.s32.totalorder %s30, 0
      %p204 = por %p202, %p203
      %p205 = scmp.ne.s32.totalorder %s197, %s199
      %p206 = scmp.eq.s32.totalorder %s35, 1
      %p207 = por %p205, %p206
      %p208 = scmp.ne.s32.totalorder %s199, %s200
      %p209 = scmp.eq.s32.totalorder %s35, 0
      %p210 = por %p208, %p209
      %p211 = scmp.ne.s32.totalorder %s199, %s200
      %p212 = scmp.eq.s32.totalorder %s36, 1
      %p213 = por %p211, %p212
      %p215 = scmp.ne.s32.totalorder %s200, %s214
      %p216 = scmp.eq.s32.totalorder %s36, 0
      %p217 = por %p215, %p216
      %s219 = sadd.s32 %s218, 1
      %p222 = scmp.eq.s32.totalorder %s30, 1
      %p223 = scmp.ne.s32.totalorder %s218, %s220
      %p224 = scmp.eq.s32.totalorder %s30, 0
      %p225 = por %p223, %p224
      %p226 = scmp.ne.s32.totalorder %s218, %s220
      %p227 = scmp.eq.s32.totalorder %s35, 1
      %p228 = por %p226, %p227
      %p229 = scmp.ne.s32.totalorder %s220, %s221
      %p230 = scmp.eq.s32.totalorder %s35, 0
      %p231 = por %p229, %p230
      %p232 = scmp.ne.s32.totalorder %s220, %s221
      %p233 = scmp.eq.s32.totalorder %s36, 1
      %p234 = por %p232, %p233
      %p236 = scmp.ne.s32.totalorder %s221, %s235
      %p237 = scmp.eq.s32.totalorder %s36, 0
      %p238 = por %p236, %p237
      %s240 = sadd.s32 %s239, 1
      %p243 = scmp.eq.s32.totalorder %s30, 1
      %p244 = scmp.ne.s32.totalorder %s239, %s241
      %p245 = scmp.eq.s32.totalorder %s30, 0
      %p246 = por %p244, %p245
      %p247 = scmp.ne.s32.totalorder %s239, %s241
      %p248 = scmp.eq.s32.totalorder %s35, 1
      %p249 = por %p247, %p248
      %p250 = scmp.ne.s32.totalorder %s241, %s242
      %p251 = scmp.eq.s32.totalorder %s35, 0
      %p252 = por %p250, %p251
      %p253 = scmp.ne.s32.totalorder %s241, %s242
      %p254 = scmp.eq.s32.totalorder %s36, 1
      %p255 = por %p253, %p254
      %p257 = scmp.ne.s32.totalorder %s242, %s256
      %p258 = scmp.eq.s32.totalorder %s36, 0
      %p259 = por %p257, %p258
      %s261 = sadd.s32 %s260, 1
      %p264 = scmp.eq.s32.totalorder %s30, 1
      %p265 = scmp.ne.s32.totalorder %s260, %s262
      %p266 = scmp.eq.s32.totalorder %s30, 0
      %p267 = por %p265, %p266
      %p268 = scmp.ne.s32.totalorder %s260, %s262
      %p269 = scmp.eq.s32.totalorder %s35, 1
      %p270 = por %p268, %p269
      %p271 = scmp.ne.s32.totalorder %s262, %s263
      %p272 = scmp.eq.s32.totalorder %s35, 0
      %p273 = por %p271, %p272
      %p274 = scmp.ne.s32.totalorder %s262, %s263
      %p275 = scmp.eq.s32.totalorder %s36, 1
      %p276 = por %p274, %p275
      %p278 = scmp.ne.s32.totalorder %s263, %s277
      %p279 = scmp.eq.s32.totalorder %s36, 0
      %p280 = por %p278, %p279
      %s282 = sadd.s32 %s281, 1
      %p285 = scmp.eq.s32.totalorder %s30, 1
      %p286 = scmp.ne.s32.totalorder %s281, %s283
      %p287 = scmp.eq.s32.totalorder %s30, 0
      %p288 = por %p286, %p287
      %p289 = scmp.ne.s32.totalorder %s281, %s283
      %p290 = scmp.eq.s32.totalorder %s35, 1
      %p291 = por %p289, %p290
      %p292 = scmp.ne.s32.totalorder %s283, %s284
      %p293 = scmp.eq.s32.totalorder %s35, 0
      %p294 = por %p292, %p293
      %p295 = scmp.ne.s32.totalorder %s283, %s284
      %p296 = scmp.eq.s32.totalorder %s36, 1
      %p297 = por %p295, %p296
      %p299 = scmp.ne.s32.totalorder %s284, %s298
      %p300 = scmp.eq.s32.totalorder %s36, 0
      %p301 = por %p299, %p300
      %s303 = sadd.s32 %s302, 1
      %p306 = scmp.eq.s32.totalorder %s30, 1
      %p307 = scmp.ne.s32.totalorder %s302, %s304
      %p308 = scmp.eq.s32.totalorder %s30, 0
      %p309 = por %p307, %p308
      %p310 = scmp.ne.s32.totalorder %s302, %s304
      %p311 = scmp.eq.s32.totalorder %s35, 1
      %p312 = por %p310, %p311
      %p313 = scmp.ne.s32.totalorder %s304, %s305
      %p314 = scmp.eq.s32.totalorder %s35, 0
      %p315 = por %p313, %p314
      %p316 = scmp.ne.s32.totalorder %s304, %s305
      %p317 = scmp.eq.s32.totalorder %s36, 1
      %p318 = por %p316, %p317
      %p320 = scmp.ne.s32.totalorder %s305, %s319
      %p321 = scmp.eq.s32.totalorder %s36, 0
      %p322 = por %p320, %p321
      %s324 = sadd.s32 %s323, 1
      %p327 = scmp.eq.s32.totalorder %s30, 1
      %p328 = scmp.ne.s32.totalorder %s323, %s325
      %p329 = scmp.eq.s32.totalorder %s30, 0
      %p330 = por %p328, %p329
      %p331 = scmp.ne.s32.totalorder %s323, %s325
      %p332 = scmp.eq.s32.totalorder %s35, 1
      %p333 = por %p331, %p332
      %p334 = scmp.ne.s32.totalorder %s325, %s326
      %p335 = scmp.eq.s32.totalorder %s35, 0
      %p336 = por %p334, %p335
      %p337 = scmp.ne.s32.totalorder %s325, %s326
      %p338 = scmp.eq.s32.totalorder %s36, 1
      %p339 = por %p337, %p338
      %p341 = scmp.ne.s32.totalorder %s326, %s340
      %p342 = scmp.eq.s32.totalorder %s36, 0
      %p343 = por %p341, %p342
      %s345 = sadd.s32 %s344, 1
      %p348 = scmp.eq.s32.totalorder %s30, 1
      %p349 = scmp.ne.s32.totalorder %s344, %s346
      %p350 = scmp.eq.s32.totalorder %s30, 0
      %p351 = por %p349, %p350
      %p352 = scmp.ne.s32.totalorder %s344, %s346
      %p353 = scmp.eq.s32.totalorder %s35, 1
      %p354 = por %p352, %p353
      %p355 = scmp.ne.s32.totalorder %s346, %s347
      %p356 = scmp.eq.s32.totalorder %s35, 0
      %p357 = por %p355, %p356
      %p358 = scmp.ne.s32.totalorder %s346, %s347
      %p359 = scmp.eq.s32.totalorder %s36, 1
      %p360 = por %p358, %p359
      %p362 = scmp.ne.s32.totalorder %s347, %s361
      %p363 = scmp.eq.s32.totalorder %s36, 0
      %p364 = por %p362, %p363
      %s366 = sadd.s32 %s365, 1
      %p369 = scmp.eq.s32.totalorder %s30, 1
      %p370 = scmp.ne.s32.totalorder %s365, %s367
      %p371 = scmp.eq.s32.totalorder %s30, 0
      %p372 = por %p370, %p371
      %p373 = scmp.ne.s32.totalorder %s365, %s367
      %p374 = scmp.eq.s32.totalorder %s35, 1
      %p375 = por %p373, %p374
      %p376 = scmp.ne.s32.totalorder %s367, %s368
      %p377 = scmp.eq.s32.totalorder %s35, 0
      %p378 = por %p376, %p377
      %p379 = scmp.ne.s32.totalorder %s367, %s368
      %p380 = scmp.eq.s32.totalorder %s36, 1
      %p381 = por %p379, %p380
      %p383 = scmp.ne.s32.totalorder %s368, %s382
      %p384 = scmp.eq.s32.totalorder %s36, 0
      %p385 = por %p383, %p384
      %s387 = sadd.s32 %s386, 1
      %p390 = scmp.eq.s32.totalorder %s30, 1
      %p391 = scmp.ne.s32.totalorder %s386, %s388
      %p392 = scmp.eq.s32.totalorder %s30, 0
      %p393 = por %p391, %p392
      %p394 = scmp.ne.s32.totalorder %s386, %s388
      %p395 = scmp.eq.s32.totalorder %s35, 1
      %p396 = por %p394, %p395
      %p397 = scmp.ne.s32.totalorder %s388, %s389
      %p398 = scmp.eq.s32.totalorder %s35, 0
      %p399 = por %p397, %p398
      %p400 = scmp.ne.s32.totalorder %s388, %s389
      %p401 = scmp.eq.s32.totalorder %s36, 1
      %p402 = por %p400, %p401
      %p404 = scmp.ne.s32.totalorder %s389, %s403
      %p405 = scmp.eq.s32.totalorder %s36, 0
      %p406 = por %p404, %p405
      %s408 = sadd.s32 %s407, 1
      %p411 = scmp.eq.s32.totalorder %s30, 1
      %p412 = scmp.ne.s32.totalorder %s407, %s409
      %p413 = scmp.eq.s32.totalorder %s30, 0
      %p414 = por %p412, %p413
      %p415 = scmp.ne.s32.totalorder %s407, %s409
      %p416 = scmp.eq.s32.totalorder %s35, 1
      %p417 = por %p415, %p416
      %p418 = scmp.ne.s32.totalorder %s409, %s410
      %p419 = scmp.eq.s32.totalorder %s35, 0
      %p420 = por %p418, %p419
      %p421 = scmp.ne.s32.totalorder %s409, %s410
      %p422 = scmp.eq.s32.totalorder %s36, 1
      %p423 = por %p421, %p422
      %p425 = scmp.ne.s32.totalorder %s410, %s424
      %p426 = scmp.eq.s32.totalorder %s36, 0
      %p427 = por %p425, %p426
      %s429 = sadd.s32 %s428, 1
      %p432 = scmp.eq.s32.totalorder %s30, 1
      %p433 = scmp.ne.s32.totalorder %s428, %s430
      %p434 = scmp.eq.s32.totalorder %s30, 0
      %p435 = por %p433, %p434
      %p436 = scmp.ne.s32.totalorder %s428, %s430
      %p437 = scmp.eq.s32.totalorder %s35, 1
      %p438 = por %p436, %p437
      %p439 = scmp.ne.s32.totalorder %s430, %s431
      %p440 = scmp.eq.s32.totalorder %s35, 0
      %p441 = por %p439, %p440
      %p442 = scmp.ne.s32.totalorder %s430, %s431
      %p443 = scmp.eq.s32.totalorder %s36, 1
      %p444 = por %p442, %p443
      %p446 = scmp.ne.s32.totalorder %s431, %s445
      %p447 = scmp.eq.s32.totalorder %s36, 0
      %p448 = por %p446, %p447
      %s449 = ssub.s32 %s37, %s49
      %s450 = ssub.s32 %s38, %s45
      %s451 = sor.u32 %s449, %s450
      %p452 = scmp.eq.s32.totalorder %s451, 0
      %s454 = sadd.s32 %s453, 1
      %s455 = scalar_select %p452, %s453, %s454
      %p458 = pneg %p452
      %p459 = scmp.eq.s32.totalorder %s30, 1
      %p460 = por %p458, %p459
      %p461 = scmp.ne.s32.totalorder %s453, %s456
      %p462 = scmp.eq.s32.totalorder %s30, 0
      %p463 = por %p461, %p462
      %p464 = scmp.ne.s32.totalorder %s453, %s456
      %p465 = scmp.eq.s32.totalorder %s35, 1
      %p466 = por %p464, %p465
      %p467 = scmp.ne.s32.totalorder %s456, %s457
      %p468 = scmp.eq.s32.totalorder %s35, 0
      %p469 = por %p467, %p468
      %p470 = scmp.ne.s32.totalorder %s456, %s457
      %p471 = scmp.eq.s32.totalorder %s36, 1
      %p472 = por %p470, %p471
      %p474 = scmp.ne.s32.totalorder %s457, %s473
      %p475 = scmp.eq.s32.totalorder %s36, 0
      %p476 = por %p474, %p475
      %p477 = scmp.le.s32.totalorder 1, %s30
      %p478 = scmp.lt.s32.totalorder %s30, 3
      %p479 = pnand %p477, %p478
      %p480 = pneg %p479
      // Predicated region
      $region9: #{tpu_custom_call.1} parent=5 // pred_check
        _
      $region10: #{tpu_custom_call.1} parent=5 // pred_check_branch
        %482 = sbr.rel (%p479) target = $region12
      $region11: #{tpu_custom_call.1} parent=5 // pred_region
        %s483 = ssub.s32 %s30, 1
        // Predicated region
        $region13: #{tpu_custom_call.1} parent=11 // pred_check
          %p484 = pneg %p147
        $region14: #{tpu_custom_call.1} parent=11 // pred_check_branch
          %486 = sbr.rel (%p484) target = $region16
        $region15: #{tpu_custom_call.1} parent=11 // pred_region
          %488 = vsyncadd [#allocation3], 0
          %s489 = sshll.u32 %s3, 4
          %s490 = int_to_ptr.hbm [resolvable:$true] %s489
          %s491 = sshll.u32 [#allocation2], 4
          %s492 = int_to_ptr.vmem [resolvable:$true] %s491
          %497 = dma.hbm_to_vmem [thread:$0]  %s490, 128, %s492, [#allocation3], 64, 64, 4
        $region16: #{tpu_custom_call.1} parent=11 // pred_fallthru
          _
        // Predicated region
        $region17: #{tpu_custom_call.1} parent=11 // pred_check
          %p498 = pneg %p168
        $region18: #{tpu_custom_call.1} parent=11 // pred_check_branch
          %500 = sbr.rel (%p498) target = $region20
        $region19: #{tpu_custom_call.1} parent=11 // pred_region
          %502 = vsyncadd [#allocation6], 0
          %s504 = sshll.u32 %s4, 4
          %s505 = int_to_ptr.hbm [resolvable:$true] %s504
          %s506 = sshll.u32 [#allocation5], 4
          %s507 = int_to_ptr.vmem [resolvable:$true] %s506
          %509 = dma.hbm_to_vmem [thread:$0]  %s505, 16, %s507, [#allocation6]
        $region20: #{tpu_custom_call.1} parent=11 // pred_fallthru
          _
        // Predicated region
        $region21: #{tpu_custom_call.1} parent=11 // pred_check
          %p510 = pneg %p189
        $region22: #{tpu_custom_call.1} parent=11 // pred_check_branch
          %512 = sbr.rel (%p510) target = $region24
        $region23: #{tpu_custom_call.1} parent=11 // pred_region
          _
        $region24: #{tpu_custom_call.1} parent=11 // pred_fallthru
          _
        // Predicated region
        $region25: #{tpu_custom_call.1} parent=11 // pred_check
          %p513 = pneg %p210
        $region26: #{tpu_custom_call.1} parent=11 // pred_check_branch
          %515 = sbr.rel (%p513) target = $region28
        $region27: #{tpu_custom_call.1} parent=11 // pred_region
          _
        $region28: #{tpu_custom_call.1} parent=11 // pred_fallthru
          _
        // Predicated region
        $region29: #{tpu_custom_call.1} parent=11 // pred_check
          %p516 = pneg %p231
        $region30: #{tpu_custom_call.1} parent=11 // pred_check_branch
          %518 = sbr.rel (%p516) target = $region32
        $region31: #{tpu_custom_call.1} parent=11 // pred_region
          %520 = vsyncadd [#allocation6], 0
          %s522 = sshll.u32 %s7, 4
          %s523 = int_to_ptr.hbm [resolvable:$true] %s522
          %s524 = sshll.u32 [#allocation7], 4
          %s525 = int_to_ptr.vmem [resolvable:$true] %s524
          %527 = dma.hbm_to_vmem [thread:$0]  %s523, 64, %s525, [#allocation6]
        $region32: #{tpu_custom_call.1} parent=11 // pred_fallthru
          _
        // Predicated region
        $region33: #{tpu_custom_call.1} parent=11 // pred_check
          %p528 = pneg %p252
        $region34: #{tpu_custom_call.1} parent=11 // pred_check_branch
          %530 = sbr.rel (%p528) target = $region36
        $region35: #{tpu_custom_call.1} parent=11 // pred_region
          _
        $region36: #{tpu_custom_call.1} parent=11 // pred_fallthru
          _
        // Predicated region
        $region37: #{tpu_custom_call.1} parent=11 // pred_check
          %p531 = pneg %p273
        $region38: #{tpu_custom_call.1} parent=11 // pred_check_branch
          %533 = sbr.rel (%p531) target = $region40
        $region39: #{tpu_custom_call.1} parent=11 // pred_region
          _
        $region40: #{tpu_custom_call.1} parent=11 // pred_fallthru
          _
        // Predicated region
        $region41: #{tpu_custom_call.1} parent=11 // pred_check
          %p534 = pneg %p294
        $region42: #{tpu_custom_call.1} parent=11 // pred_check_branch
          %536 = sbr.rel (%p534) target = $region44
        $region43: #{tpu_custom_call.1} parent=11 // pred_region
          _
        $region44: #{tpu_custom_call.1} parent=11 // pred_fallthru
          _
        // Predicated region
        $region45: #{tpu_custom_call.1} parent=11 // pred_check
          %p537 = pneg %p315
        $region46: #{tpu_custom_call.1} parent=11 // pred_check_branch
          %539 = sbr.rel (%p537) target = $region48
        $region47: #{tpu_custom_call.1} parent=11 // pred_region
          _
        $region48: #{tpu_custom_call.1} parent=11 // pred_fallthru
          _
        // Predicated region
        $region49: #{tpu_custom_call.1} parent=11 // pred_check
          %p540 = pneg %p336
        $region50: #{tpu_custom_call.1} parent=11 // pred_check_branch
          %542 = sbr.rel (%p540) target = $region52
        $region51: #{tpu_custom_call.1} parent=11 // pred_region
          _
        $region52: #{tpu_custom_call.1} parent=11 // pred_fallthru
          _
        // Predicated region
        $region53: #{tpu_custom_call.1} parent=11 // pred_check
          %p543 = pneg %p357
        $region54: #{tpu_custom_call.1} parent=11 // pred_check_branch
          %545 = sbr.rel (%p543) target = $region56
        $region55: #{tpu_custom_call.1} parent=11 // pred_region
          %547 = vsyncadd [#allocation9], 0
          %s548 = sshll.u32 %s13, 4
          %s549 = int_to_ptr.hbm [resolvable:$true] %s548
          %s550 = sshll.u32 [#allocation8], 4
          %s551 = int_to_ptr.vmem [resolvable:$true] %s550
          %556 = dma.hbm_to_vmem [thread:$0]  %s549, 256, %s551, [#allocation9], 64, 64, 4
        $region56: #{tpu_custom_call.1} parent=11 // pred_fallthru
          _
        // Predicated region
        $region57: #{tpu_custom_call.1} parent=11 // pred_check
          %p557 = pneg %p378
        $region58: #{tpu_custom_call.1} parent=11 // pred_check_branch
          %559 = sbr.rel (%p557) target = $region60
        $region59: #{tpu_custom_call.1} parent=11 // pred_region
          _
        $region60: #{tpu_custom_call.1} parent=11 // pred_fallthru
          _
        // Predicated region
        $region61: #{tpu_custom_call.1} parent=11 // pred_check
          %p560 = pneg %p399
        $region62: #{tpu_custom_call.1} parent=11 // pred_check_branch
          %562 = sbr.rel (%p560) target = $region64
        $region63: #{tpu_custom_call.1} parent=11 // pred_region
          _
        $region64: #{tpu_custom_call.1} parent=11 // pred_fallthru
          _
        // Predicated region
        $region65: #{tpu_custom_call.1} parent=11 // pred_check
          %p563 = pneg %p420
        $region66: #{tpu_custom_call.1} parent=11 // pred_check_branch
          %565 = sbr.rel (%p563) target = $region68
        $region67: #{tpu_custom_call.1} parent=11 // pred_region
          _
        $region68: #{tpu_custom_call.1} parent=11 // pred_fallthru
          _
        // Predicated region
        $region69: #{tpu_custom_call.1} parent=11 // pred_check
          %p566 = pneg %p441
        $region70: #{tpu_custom_call.1} parent=11 // pred_check_branch
          %568 = sbr.rel (%p566) target = $region72
        $region71: #{tpu_custom_call.1} parent=11 // pred_region
          _
        $region72: #{tpu_custom_call.1} parent=11 // pred_fallthru
          _
      $region12: #{tpu_custom_call.1} parent=5 // pred_fallthru
        _
      %p569 = scmp.lt.s32.totalorder %s30, 2
      // Predicated region
      $region73: #{tpu_custom_call.1} parent=5 // pred_check
        %p570 = pneg %p569
      $region74: #{tpu_custom_call.1} parent=5 // pred_check_branch
        %572 = sbr.rel (%p570) target = $region76
      $region75: #{tpu_custom_call.1} parent=5 // pred_region
        // Predicated region
        $region77: #{tpu_custom_call.1} parent=75 // pred_check
          %p573 = pneg %p64
        $region78: #{tpu_custom_call.1} parent=75 // pred_check_branch
          %575 = sbr.rel (%p573) target = $region80
        $region79: #{tpu_custom_call.1} parent=75 // pred_region
          %p576 = scmp.lt.s32.totalorder %s37, 1
          %s577 = scalar_select %p576, %s37, 1
          %p578 = scmp.lt.s32.totalorder %s38, 0
          %s579 = scalar_select %p578, %s38, 0
          %s580 = sadd.s32 %s579, %s577
          %s581 = smul.addr %s580, 8
          %s582 = scalar_lea.vmem %s0, %s581
        $region80: #{tpu_custom_call.1} parent=75 // pred_fallthru
          _
        // Predicated region
        $region81: #{tpu_custom_call.1} parent=75 // pred_check
          %p583 = pneg %p92
        $region82: #{tpu_custom_call.1} parent=75 // pred_check_branch
          %585 = sbr.rel (%p583) target = $region84
        $region83: #{tpu_custom_call.1} parent=75 // pred_region
          %p586 = scmp.lt.s32.totalorder %s37, 1
          %s587 = scalar_select %p586, %s37, 1
          %p588 = scmp.lt.s32.totalorder %s38, 0
          %s589 = scalar_select %p588, %s38, 0
          %s590 = sadd.s32 %s589, %s587
          %s591 = smul.addr %s590, 8
          %s592 = scalar_lea.vmem %s1, %s591
        $region84: #{tpu_custom_call.1} parent=75 // pred_fallthru
          _
        // Predicated region
        $region85: #{tpu_custom_call.1} parent=75 // pred_check
          %p593 = pneg %p120
        $region86: #{tpu_custom_call.1} parent=75 // pred_check_branch
          %595 = sbr.rel (%p593) target = $region88
        $region87: #{tpu_custom_call.1} parent=75 // pred_region
          %p596 = scmp.lt.s32.totalorder %s37, 1
          %s597 = scalar_select %p596, %s37, 1
          %p598 = scmp.lt.s32.totalorder %s38, 0
          %s599 = scalar_select %p598, %s38, 0
          %s600 = sadd.s32 %s599, %s597
          %s601 = smul.addr %s600, 8
          %s602 = scalar_lea.vmem %s2, %s601
        $region88: #{tpu_custom_call.1} parent=75 // pred_fallthru
          _
      $region76: #{tpu_custom_call.1} parent=5 // pred_fallthru
        _
      %p603 = scmp.le.s32.totalorder 1, %s30
      %p604 = scmp.lt.s32.totalorder %s30, 3
      %p605 = pnand %p603, %p604
      %p606 = pneg %p605
      // Predicated region
      $region89: #{tpu_custom_call.1} parent=5 // pred_check
        _
      $region90: #{tpu_custom_call.1} parent=5 // pred_check_branch
        %608 = sbr.rel (%p605) target = $region92
      $region91: #{tpu_custom_call.1} parent=5 // pred_region
        %s609 = ssub.s32 %s30, 1
        // Predicated region
        $region93: #{tpu_custom_call.1} parent=91 // pred_check
          %p610 = pneg %p147
        $region94: #{tpu_custom_call.1} parent=91 // pred_check_branch
          %612 = sbr.rel (%p610) target = $region96
        $region95: #{tpu_custom_call.1} parent=91 // pred_region
          %614 = dma.done [#allocation3], 128
        $region96: #{tpu_custom_call.1} parent=91 // pred_fallthru
          _
        // Predicated region
        $region97: #{tpu_custom_call.1} parent=91 // pred_check
          %p615 = pneg %p168
        $region98: #{tpu_custom_call.1} parent=91 // pred_check_branch
          %617 = sbr.rel (%p615) target = $region100
        $region99: #{tpu_custom_call.1} parent=91 // pred_region
          %619 = dma.done [#allocation6], 16
        $region100: #{tpu_custom_call.1} parent=91 // pred_fallthru
          _
        // Predicated region
        $region101: #{tpu_custom_call.1} parent=91 // pred_check
          %p620 = pneg %p231
        $region102: #{tpu_custom_call.1} parent=91 // pred_check_branch
          %622 = sbr.rel (%p620) target = $region104
        $region103: #{tpu_custom_call.1} parent=91 // pred_region
          %624 = dma.done [#allocation6], 64
        $region104: #{tpu_custom_call.1} parent=91 // pred_fallthru
          _
        // Predicated region
        $region105: #{tpu_custom_call.1} parent=91 // pred_check
          %p625 = pneg %p357
        $region106: #{tpu_custom_call.1} parent=91 // pred_check_branch
          %627 = sbr.rel (%p625) target = $region108
        $region107: #{tpu_custom_call.1} parent=91 // pred_region
          %629 = dma.done [#allocation9], 256
        $region108: #{tpu_custom_call.1} parent=91 // pred_fallthru
          _
        %p630 = scmp.lt.s32.totalorder %s39, 1
        %s631 = scalar_select %p630, %s39, 1
        %p632 = scmp.lt.s32.totalorder %s40, 0
        %s633 = scalar_select %p632, %s40, 0
        %s634 = sadd.s32 %s633, %s631
        %s635 = smul.addr %s634, 8
        %s636 = scalar_lea.vmem %s0, %s635
        %p637 = pneg %p70
        %p638 = pneg %p67
        %p639 = scmp.lt.s32.totalorder %s39, 1
        %s640 = scalar_select %p639, %s39, 1
        %p641 = scmp.lt.s32.totalorder %s40, 0
        %s642 = scalar_select %p641, %s40, 0
        %s643 = sadd.s32 %s642, %s640
        %s644 = smul.addr %s643, 8
        %s645 = scalar_lea.vmem %s1, %s644
        %p646 = pneg %p98
        %p647 = pneg %p95
        %p648 = scmp.lt.s32.totalorder %s39, 1
        %s649 = scalar_select %p648, %s39, 1
        %p650 = scmp.lt.s32.totalorder %s40, 0
        %s651 = scalar_select %p650, %s40, 0
        %s652 = sadd.s32 %s651, %s649
        %s653 = smul.addr %s652, 8
        %s654 = scalar_lea.vmem %s2, %s653
        %p655 = pneg %p126
        %p656 = pneg %p123
        %p657 = pneg %p147
        %p658 = pneg %p144
        %p659 = pneg %p168
        %p660 = pneg %p165
        %p661 = pneg %p189
        %p662 = pneg %p186
        %p663 = pneg %p210
        %p664 = pneg %p207
        %p665 = pneg %p231
        %p666 = pneg %p228
        %p667 = pneg %p252
        %p668 = pneg %p249
        %p669 = pneg %p273
        %p670 = pneg %p270
        %p671 = pneg %p294
        %p672 = pneg %p291
        %p673 = pneg %p315
        %p674 = pneg %p312
        %p675 = pneg %p336
        %p676 = pneg %p333
        %p677 = pneg %p357
        %p678 = pneg %p354
        %p679 = pneg %p378
        %p680 = pneg %p375
        %p681 = pneg %p399
        %p682 = pneg %p396
        %p683 = pneg %p420
        %p684 = pneg %p417
        %p685 = pneg %p441
        %p686 = pneg %p438
        %p687 = pneg %p469
        %p688 = pneg %p466
        %s689 = sand.u32 %s456, 1
        %s690 = scalar_lea.sflag [#allocation4], %s689
        %s691 = sand.u32 %s456, 1
        %s692 = smul.addr %s691, 24
        %s693 = scalar_lea.vmem [#allocation10], %s692
        %p694 = scmp.lt.s32.totalorder %s39, 1
        %s695 = scalar_select %p694, %s39, 1
        %p696 = scmp.lt.s32.totalorder %s40, 0
        %s697 = scalar_select %p696, %s40, 0
        %s698 = sadd.s32 %s697, %s695
        %s699 = smul.addr %s698, 8
        %s700 = scalar_lea.vmem %s0, %s699
        %p701 = scmp.lt.s32.totalorder %s39, 1
        %s702 = scalar_select %p701, %s39, 1
        %p703 = scmp.lt.s32.totalorder %s40, 0
        %s704 = scalar_select %p703, %s40, 0
        %s705 = sadd.s32 %s704, %s702
        %s706 = smul.addr %s705, 8
        %s707 = scalar_lea.vmem %s1, %s706
        %p708 = scmp.lt.s32.totalorder %s39, 1
        %s709 = scalar_select %p708, %s39, 1
        %p710 = scmp.lt.s32.totalorder %s40, 0
        %s711 = scalar_select %p710, %s40, 0
        %s712 = sadd.s32 %s711, %s709
        %s713 = smul.addr %s712, 8
        %s714 = scalar_lea.vmem %s2, %s713
        %v716 = vld [vmem:[%s700] sm:$0xff]
        %v717 = vpack.c.bf16 %v716, %v716
        %v718 = vld [vmem:[#allocation2] sm:$0xf]
        %v719 = vld [vmem:[#allocation2 + $0x4] sm:$0xf]
        %v720 = vld [vmem:[#allocation5] sm:$0x1]
        %v722 = vperm.slane %v720, 0
        %v726 = vunpack.c.l.b16 %v718
        %v727 = vunpack.c.l.b16 %v719
        %v728 = vpack.c.b16 %v727, %v726
        %vm730 = vcmask 130048
        %v732 = vsel %vm730, %v717, 0
        %734 = vmatpush.bf16.msra.mxu0 0
        %735 = vmatpush.bf16.msra.mxu0 0
        %736 = vmatpush.bf16.msra.mxu0 0
        %737 = vmatpush.bf16.msra.mxu0 0
        %738 = vmatpush.bf16.msra.mxu0 0
        %739 = vmatpush.bf16.msra.mxu0 0
        %740 = vmatpush.bf16.msra.mxu0 0
        %741 = vmatpush.bf16.msra.mxu0 %v728
        %742 = vmatmul.bf16.gmra.mxu0 %v732
        %v743 = vpop.f32.mrf.mxu0
        %v744 = vadd.f32 %v722, %v743
        %v745 = vpop.f32.mrf.mxu0
        %746 = vdwg.mxu0
        %v747 = vmul.f32 %v744, %v744
        %v748 = vmul.f32 %v744, %v747
        %v749 = vmul.f32 %v748, 0.044715
        %v750 = vadd.f32 %v744, %v749
        %v751 = vmul.f32 %v750, 0.7978846
        %v752 = vtanh.pop %v751
        %v753 = vadd.f32 %v752, 1.0
        %v754 = vmul.f32 %v753, 0.5
        %v755 = vmul.f32 %v744, %v754
        %v756 = vpack.c.bf16 %v755, %v755
        %v757 = vld [vmem:[%s5] sm:$0xf]
        %v758 = vld [vmem:[%s5 + $0x4] sm:$0xf]
        %v759 = vld [vmem:[%s5 + $0x8] sm:$0xf]
        %v760 = vld [vmem:[%s5 + $0xc] sm:$0xf]
        %v761 = vld [vmem:[%s6] sm:$0x1]
        %v763 = vperm.slane %v761, 0
        %v769 = vunpack.c.l.b16 %v757
        %v770 = vunpack.c.l.b16 %v758
        %v771 = vunpack.c.l.b16 %v759
        %v772 = vunpack.c.l.b16 %v760
        %v773 = vpack.c.b16 %v770, %v769
        %v774 = vpack.c.b16 %v772, %v771
        %vm777 = vcmask 261120
        %v779 = vsel %vm777, %v756, 0
        %781 = vmatpush.bf16.msra.mxu0 0
        %782 = vmatpush.bf16.msra.mxu0 0
        %783 = vmatpush.bf16.msra.mxu0 0
        %784 = vmatpush.bf16.msra.mxu0 0
        %785 = vmatpush.bf16.msra.mxu0 0
        %786 = vmatpush.bf16.msra.mxu0 0
        %787 = vmatpush.bf16.msra.mxu0 %v774
        %788 = vmatpush.bf16.msra.mxu0 %v773
        %789 = vmatmul.bf16.gmra.mxu0 %v779
        %v790 = vpop.f32.mrf.mxu0
        %v791 = vadd.f32 %v763, %v790
        %v792 = vpop.f32.mrf.mxu0
        %793 = vdwg.mxu0
        %v794 = vld [vmem:[%s707] sm:$0xff]
        %v795 = vpack.c.bf16 %v794, %v794
        %v796 = vld [vmem:[#allocation7] sm:$0x7]
        %v797 = vld [vmem:[%s8] sm:$0x1]
        %v799 = vperm.slane %v797, 0
        %vm801 = vcmask 48128
        %v803 = vsel %vm801, %v795, 0
        %vm805 = vcmask 1042432
        %v807 = vsel %vm805, %v796, 0
        %809 = vmatpush.bf16.msra.mxu0 0
        %810 = vmatpush.bf16.msra.mxu0 0
        %811 = vmatpush.bf16.msra.mxu0 0
        %812 = vmatpush.bf16.msra.mxu0 0
        %813 = vmatpush.bf16.msra.mxu0 0
        %814 = vmatpush.bf16.msra.mxu0 0
        %815 = vmatpush.bf16.msra.mxu0 0
        %816 = vmatpush.bf16.msra.mxu0 %v807
        %817 = vmatmul.bf16.gmra.mxu0 %v803
        %v818 = vpop.f32.mrf.mxu0
        %v819 = vadd.f32 %v799, %v818
        %v820 = vpop.f32.mrf.mxu0
        %821 = vdwg.mxu0
        %v822 = vmul.f32 %v819, %v819
        %v823 = vmul.f32 %v819, %v822
        %v824 = vmul.f32 %v823, 0.044715
        %v825 = vadd.f32 %v819, %v824
        %v826 = vmul.f32 %v825, 0.7978846
        %v827 = vtanh.pop %v826
        %v828 = vadd.f32 %v827, 1.0
        %v829 = vmul.f32 %v828, 0.5
        %v830 = vmul.f32 %v819, %v829
        %v831 = vpack.c.bf16 %v830, %v830
        %v832 = vld [vmem:[%s9] sm:$0xf]
        %v833 = vld [vmem:[%s9 + $0x4] sm:$0xf]
        %v834 = vld [vmem:[%s9 + $0x8] sm:$0xf]
        %v835 = vld [vmem:[%s9 + $0xc] sm:$0xf]
        %v836 = vld [vmem:[%s10] sm:$0x1]
        %v838 = vperm.slane %v836, 0
        %v844 = vunpack.c.l.b16 %v832
        %v845 = vunpack.c.l.b16 %v833
        %v846 = vunpack.c.l.b16 %v834
        %v847 = vunpack.c.l.b16 %v835
        %v848 = vpack.c.b16 %v845, %v844
        %v849 = vpack.c.b16 %v847, %v846
        %v853 = vsel %vm777, %v831, 0
        %855 = vmatpush.bf16.msra.mxu0 0
        %856 = vmatpush.bf16.msra.mxu0 0
        %857 = vmatpush.bf16.msra.mxu0 0
        %858 = vmatpush.bf16.msra.mxu0 0
        %859 = vmatpush.bf16.msra.mxu0 0
        %860 = vmatpush.bf16.msra.mxu0 0
        %861 = vmatpush.bf16.msra.mxu0 %v849
        %862 = vmatpush.bf16.msra.mxu0 %v848
        %863 = vmatmul.bf16.gmra.mxu0 %v853
        %v864 = vpop.f32.mrf.mxu0
        %v865 = vadd.f32 %v838, %v864
        %v866 = vpop.f32.mrf.mxu0
        %867 = vdwg.mxu0
        %v868 = vld [vmem:[%s714] sm:$0xff]
        %v869 = vld [vmem:[%s11] sm:$0x1]
        %871 = vset.pattern.permute.xlu0 0
        %872 = vperm.xlu0 %871, %v868
        %v873 = vpop.permute.xlu0 %872
        %v876 = vperm.slane %v869, 0
        %v878 = vmul.f32 %v873, %v876
        %v879 = vld [vmem:[%s12] sm:$0x1]
        %v881 = vperm.slane %v879, 0
        %v883 = vadd.f32 %v878, %v881
        %v884 = vmul.f32 %v883, %v883
        %v885 = vmul.f32 %v883, %v884
        %v886 = vmul.f32 %v885, 0.044715
        %v887 = vadd.f32 %v883, %v886
        %v888 = vmul.f32 %v887, 0.7978846
        %v889 = vtanh.pop %v888
        %v890 = vadd.f32 %v889, 1.0
        %v891 = vmul.f32 %v890, 0.5
        %v892 = vmul.f32 %v883, %v891
        %v893 = vpack.c.bf16 %v892, %v892
        %v894 = vld [vmem:[#allocation8] sm:$0xf]
        %v895 = vld [vmem:[#allocation8 + $0x4] sm:$0xf]
        %v896 = vld [vmem:[#allocation8 + $0x8] sm:$0xf]
        %v897 = vld [vmem:[#allocation8 + $0xc] sm:$0xf]
        %v898 = vld [vmem:[%s14] sm:$0x1]
        %v900 = vperm.slane %v898, 0
        %v906 = vunpack.c.l.b16 %v894
        %v907 = vunpack.c.l.b16 %v895
        %v908 = vunpack.c.l.b16 %v896
        %v909 = vunpack.c.l.b16 %v897
        %v910 = vpack.c.b16 %v907, %v906
        %v911 = vpack.c.b16 %v909, %v908
        %v915 = vsel %vm777, %v893, 0
        %917 = vmatpush.bf16.msra.mxu0 0
        %918 = vmatpush.bf16.msra.mxu0 0
        %919 = vmatpush.bf16.msra.mxu0 0
        %920 = vmatpush.bf16.msra.mxu0 0
        %921 = vmatpush.bf16.msra.mxu0 0
        %922 = vmatpush.bf16.msra.mxu0 0
        %923 = vmatpush.bf16.msra.mxu0 %v911
        %924 = vmatpush.bf16.msra.mxu0 %v910
        %925 = vmatmul.bf16.gmra.mxu0 %v915
        %v926 = vpop.f32.mrf.mxu0
        %v927 = vadd.f32 %v900, %v926
        %v928 = vpop.f32.mrf.mxu0
        %929 = vdwg.mxu0
        %v930 = vld [vmem:[%s15] sm:$0x1]
        %v932 = vperm.slane %v930, 0
        %v934 = vadd.f32 %v927, %v932
        %935 = vst.msk [vmem:[%s693] sm:$0xff] %vm777, %v934
        %v936 = vld [vmem:[%s16] sm:$0x1]
        %v938 = vperm.slane %v936, 0
        %v940 = vadd.f32 %v791, %v938
        %s941 = scalar_lea.vmem %s693, 8 [#allocation10]
        %942 = vst.msk [vmem:[%s941] sm:$0xff] %vm777, %v940
        %v943 = vld [vmem:[%s17] sm:$0x1]
        %v945 = vperm.slane %v943, 0
        %v947 = vadd.f32 %v865, %v945
        %s948 = scalar_lea.vmem %s693, 16 [#allocation10]
        %949 = vst.msk [vmem:[%s948] sm:$0xff] %vm777, %v947
        %s950 = sand.u32 %s456, 1
        %s951 = scalar_lea.sflag [#allocation4], %s950
        %s952 = sand.u32 %s456, 1
        %s953 = smul.addr %s952, 24
        %s954 = scalar_lea.vmem [#allocation10], %s953
        // Predicated region
        $region109: #{tpu_custom_call.1} parent=91 // pred_check
          %p955 = pneg %p466
        $region110: #{tpu_custom_call.1} parent=91 // pred_check_branch
          %957 = sbr.rel (%p955) target = $region112
        $region111: #{tpu_custom_call.1} parent=91 // pred_region
          %959 = vsyncadd %s951, 0
          %s960 = smul.addr %s39, 3
          %s961 = sadd.s32 %s40, %s960
          %s962 = smul.addr %s961, 8
          %s963 = scalar_lea.hbm %s18, %s962
          %s964 = sshll.u32 %s954, 4
          %s965 = int_to_ptr.vmem [resolvable:$true] %s964
          %s966 = sshll.u32 %s963, 4
          %s967 = int_to_ptr.hbm [resolvable:$true] %s966
          %972 = dma.vmem_to_hbm [thread:$0]  %s965, 384, %s967, %s951, 128, 128, 8
        $region112: #{tpu_custom_call.1} parent=91 // pred_fallthru
          _
      $region92: #{tpu_custom_call.1} parent=5 // pred_fallthru
        _
      %p973 = scmp.le.s32.totalorder 2, %s30
      // Predicated region
      $region113: #{tpu_custom_call.1} parent=5 // pred_check
        %p974 = pneg %p973
      $region114: #{tpu_custom_call.1} parent=5 // pred_check_branch
        %976 = sbr.rel (%p974) target = $region116
      $region115: #{tpu_custom_call.1} parent=5 // pred_region
        %s977 = ssub.s32 %s30, 2
        // Predicated region
        $region117: #{tpu_custom_call.1} parent=115 // pred_check
          %p978 = pneg %p472
        $region118: #{tpu_custom_call.1} parent=115 // pred_check_branch
          %980 = sbr.rel (%p978) target = $region120
        $region119: #{tpu_custom_call.1} parent=115 // pred_region
          %s981 = sand.u32 %s457, 1
          %s982 = scalar_lea.sflag [#allocation4], %s981
          %s983 = sand.u32 %s457, 1
          %s984 = smul.addr %s983, 24
          %s985 = scalar_lea.vmem [#allocation10], %s984
          %987 = dma.done %s982, 384
        $region120: #{tpu_custom_call.1} parent=115 // pred_fallthru
          _
      $region116: #{tpu_custom_call.1} parent=5 // pred_fallthru
        _
    $region6: #{tpu_custom_call.1} parent=1 // loop_footer
      %s34 = sadd.s32 1, %s30
    $region7: #{tpu_custom_call.1} parent=1 // loop_footer_branch
      %29 = sbr.rel target = $region3
    $region8: #{tpu_custom_call.1} parent=1 // loop_exit
      _
    %988 = vsyncpa [#allocation3], 1
    %s989 = scalar_lea.sflag [#allocation3], 1
    %990 = vsyncpa %s989, 1
    %991 = vsyncpa [#allocation6], 1
    %992 = vsyncpa [#allocation9], 1
    %993 = vsyncpa [#allocation4], 1
    %s994 = scalar_lea.sflag [#allocation4], 1
    %995 = vsyncpa %s994, 1

</llo_original>
